<compile_context>
chip_gen: v6e
topology: v6e:2x2x1
jax: 0.10.0
libtpu: 0.0.40
codegen_flags: <defaults>
</compile_context>

<pallas_src>
import functools

import jax
import jax.numpy as jnp
import numpy as np
from jax.experimental import pallas as pl
from jax.experimental.pallas import tpu as pltpu


def _contra_kernel(act_ref, w_ref, b_ref, o_ref, acc_ref):
    # act_ref: (1, C, TK)  bf16 conv output chunk (pre-sigmoid), spatial on lanes
    # w_ref  : (TK, dim)   bf16 MLP weight chunk (in_features, out_features)
    # b_ref  : (1, dim)    f32 MLP bias
    # o_ref  : (1, C, dim) f32 output block (resident across the k axis)
    # acc_ref: (C, dim)    f32 VMEM scratch accumulator
    k = pl.program_id(1)

    @pl.when(k == 0)
    def _():
        acc_ref[...] = jnp.zeros_like(acc_ref)

    # sigmoid in f32 on the EUP (overlaps the MXU matmul of neighboring chunks)
    sig = jax.nn.sigmoid(act_ref[0].astype(jnp.float32))            # (C, TK) f32
    # partial MLP contraction for this chunk: bf16 MXU operands, f32 accumulate
    acc_ref[...] += jnp.dot(sig.astype(jnp.bfloat16), w_ref[...],
                            preferred_element_type=jnp.float32)

    @pl.when(k == pl.num_programs(1) - 1)
    def _():
        o_ref[0] = jnp.maximum(acc_ref[...] + b_ref[...], 0.0)      # bias + ReLU, f32


def contra_module_forward(x, conv_w, mlp_w, mlp_b, *, dim, tk=4096):
    """x: (N, C, H, W) f32; conv_w: (C, C, 3, 3) f32; mlp_w: (H/2*W/2, dim) f32; mlp_b: (dim,)."""
    N, C, H, W = x.shape
    assert H % 2 == 0 and W % 2 == 0, "stride-2 / pad-1 conv assumes even spatial dims"
    Ho, Wo = H // 2, W // 2
    HW = Ho * Wo
    assert mlp_w.shape[0] == HW, "Linear in_features must match conv output H*W"
    assert HW % 128 == 0

    # ---- tiny conv stays in XLA (HBM-bound kernel; conv is ~4.7 MFLOP/batch) ----
    conv = jax.lax.conv_general_dilated(
        x, conv_w, window_strides=(2, 2), padding=((1, 1), (1, 1)),
        dimension_numbers=("NCHW", "OIHW", "NCHW"))
    act = conv.reshape(N, C, HW).astype(jnp.bfloat16)                # (N, C, HW) bf16
    mw = mlp_w.astype(jnp.bfloat16)                                  # (HW, dim) bf16
    mb = mlp_b.reshape(1, dim).astype(jnp.float32)                   # (1, dim) f32

    if HW % tk != 0:
        tk = HW                                                      # fallback for odd shapes
    nk = HW // tk

    grid_spec = pltpu.PrefetchScalarGridSpec(
        num_scalar_prefetch=0,
        grid=(N, nk),                                                # batch (parallel), HW chunks (reduction)
        in_specs=[
            pl.BlockSpec((1, C, tk), lambda n, k: (n, 0, k)),        # conv-output chunk
            pl.BlockSpec((tk, dim), lambda n, k: (k, 0)),            # MLP weight chunk
            pl.BlockSpec((1, dim), lambda n, k: (0, 0)),             # bias (grid-invariant)
        ],
        out_specs=pl.BlockSpec((1, C, dim), lambda n, k: (n, 0, 0)), # resident across k
        scratch_shapes=[pltpu.VMEM((C, dim), jnp.float32)],          # f32 accumulator
    )

    cost = pl.CostEstimate(
        flops=2 * N * C * HW * dim,
        transcendentals=N * C * HW,
        bytes_accessed=N * HW * dim * 2 + N * C * HW * 2 + N * C * dim * 4 + dim * 4,
    )

    return pl.pallas_call(
        _contra_kernel,
        out_shape=jax.ShapeDtypeStruct((N, C, dim), jnp.float32),
        grid_spec=grid_spec,
        compiler_params=pltpu.CompilerParams(
            dimension_semantics=("parallel", "arbitrary"),           # batch across TCs on v7x
        ),
        cost_estimate=cost,
    )(act, mw, mb)


if __name__ == "__main__":
    # Linear(128*128, dim) in the module forces the conv output to be 128x128,
    # so the input spatial size must be 256x256 (3x3 conv, stride 2, pad 1).
    channel = 4
    dim = 128
    N, H, W = 2, 256, 256

    key = jax.random.PRNGKey(0)
    kx, kc, kw, kb = jax.random.split(key, 4)
    x = jax.random.normal(kx, (N, channel, H, W), jnp.float32)
    conv_w = jax.random.normal(kc, (channel, channel, 3, 3), jnp.float32) / np.sqrt(channel * 9)
    mlp_w = jax.random.normal(kw, (128 * 128, dim), jnp.float32) / np.sqrt(128 * 128)
    mlp_b = jax.random.normal(kb, (dim,), jnp.float32) * 0.01

    fwd = jax.jit(functools.partial(contra_module_forward, dim=dim))
    out = jax.block_until_ready(fwd(x, conv_w, mlp_w, mlp_b))

    # pure-JAX f32 reference (same semantics as the PyTorch forward)
    conv_ref = jax.lax.conv_general_dilated(
        x, conv_w, window_strides=(2, 2), padding=((1, 1), (1, 1)),
        dimension_numbers=("NCHW", "OIHW", "NCHW"))
    ccam_ref = jax.nn.sigmoid(conv_ref).reshape(N, channel, 128 * 128)
    ref = jax.nn.relu(jnp.einsum("ncp,pd->ncd", ccam_ref, mlp_w) + mlp_b)

    np.testing.assert_allclose(np.asarray(out), np.asarray(ref), rtol=5e-2, atol=5e-2)
    assert out.shape == (N, channel, dim)
    print("KERNEL_OK")
</pallas_src>

<mosaic_0001>
module attributes {stable_mosaic.version = 11 : i64} {
  func.func @_contra_kernel(%arg0: i32, %arg1: i32, %arg2: memref<1x4x4096xbf16, #tpu.memory_space<vmem>>, %arg3: memref<4096x128xbf16, #tpu.memory_space<vmem>>, %arg4: memref<1x128xf32, #tpu.memory_space<vmem>>, %arg5: memref<1x4x128xf32, #tpu.memory_space<vmem>>, %arg6: memref<4x128xf32, #tpu.memory_space<vmem>>) attributes {dimension_semantics = [#tpu.dimension_semantics<parallel>, #tpu.dimension_semantics<arbitrary>], iteration_bounds = array<i64: 2, 4>, scalar_prefetch = 0 : i64, scratch_operands = 1 : i64, tpu.core_type = #tpu.core_type<tc>, window_params = [{transform_indices = @transform_0, window_bounds = array<i64: 1, 4, 4096>}, {transform_indices = @transform_1, window_bounds = array<i64: 4096, 128>}, {pipeline_mode = #tpu.pipeline_mode<synchronous>, transform_indices = @transform_2, window_bounds = array<i64: 1, 128>}, {transform_indices = @transform_3, window_bounds = array<i64: 1, 4, 128>}]} {
    %c0_i32 = arith.constant 0 : i32
    %0 = arith.cmpi eq, %arg1, %c0_i32 : i32
    %1 = arith.extui %0 : i1 to i32
    %c0_i32_0 = arith.constant 0 : i32
    %2 = arith.cmpi ne, %1, %c0_i32_0 : i32
    scf.if %2 {
      %cst_11 = arith.constant 0.000000e+00 : f32
      %20 = vector.broadcast %cst_11 : f32 to vector<4x128xf32>
      %c0_12 = arith.constant 0 : index
      %c0_13 = arith.constant 0 : index
      %21 = vector.load %arg6[%c0_12, %c0_13] : memref<4x128xf32, #tpu.memory_space<vmem>>, vector<4x128xf32>
      tpu.vector_store %arg6[%c0_12, %c0_13], %20 {strides = array<i32>} : memref<4x128xf32, #tpu.memory_space<vmem>>, vector<4x128xf32>,
    } else {
    }
    %c0 = arith.constant 0 : index
    %c0_1 = arith.constant 0 : index
    %c0_2 = arith.constant 0 : index
    %3 = vector.load %arg2[%c0, %c0_1, %c0_2] : memref<1x4x4096xbf16, #tpu.memory_space<vmem>>, vector<1x4x4096xbf16>
    %4 = vector.shape_cast %3 : vector<1x4x4096xbf16> to vector<4x4096xbf16>
    %5 = arith.extf %4 : vector<4x4096xbf16> to vector<4x4096xf32>
    %6 = arith.negf %5 : vector<4x4096xf32>
    %7 = math.exp %6 : vector<4x4096xf32>
    %cst = arith.constant 1.000000e+00 : f32
    %8 = vector.broadcast %cst : f32 to vector<4x4096xf32>
    %9 = arith.addf %8, %7 : vector<4x4096xf32>
    %10 = arith.divf %8, %9 : vector<4x4096xf32>
    %c0_3 = arith.constant 0 : index
    %c0_4 = arith.constant 0 : index
    %11 = vector.load %arg6[%c0_3, %c0_4] : memref<4x128xf32, #tpu.memory_space<vmem>>, vector<4x128xf32>
    %12 = arith.truncf %10 : vector<4x4096xf32> to vector<4x4096xbf16>
    %c0_5 = arith.constant 0 : index
    %c0_6 = arith.constant 0 : index
    %13 = vector.load %arg3[%c0_5, %c0_6] : memref<4096x128xbf16, #tpu.memory_space<vmem>>, vector<4096x128xbf16>
    %cst_7 = arith.constant dense<0.000000e+00> : vector<4x128xf32>
    %14 = tpu.matmul %12, %13, %cst_7 {dimension_numbers = #tpu.dot_dimension_numbers<[1], [0], [0], [1], [0, 0, 1, 1], [], []>} : vector<4x4096xbf16>, vector<4096x128xbf16>, vector<4x128xf32> -> vector<4x128xf32>
    %15 = arith.addf %11, %14 : vector<4x128xf32>
    %c0_8 = arith.constant 0 : index
    %c0_9 = arith.constant 0 : index
    %16 = vector.load %arg6[%c0_8, %c0_9] : memref<4x128xf32, #tpu.memory_space<vmem>>, vector<4x128xf32>
    tpu.vector_store %arg6[%c0_8, %c0_9], %15 {strides = array<i32>} : memref<4x128xf32, #tpu.memory_space<vmem>>, vector<4x128xf32>,
    %c3_i32 = arith.constant 3 : i32
    %17 = arith.cmpi eq, %arg1, %c3_i32 : i32
    %18 = arith.extui %17 : i1 to i32
    %c0_i32_10 = arith.constant 0 : i32
    %19 = arith.cmpi ne, %18, %c0_i32_10 : i32
    scf.if %19 {
      %c0_11 = arith.constant 0 : index
      %c0_12 = arith.constant 0 : index
      %20 = vector.load %arg6[%c0_11, %c0_12] : memref<4x128xf32, #tpu.memory_space<vmem>>, vector<4x128xf32>
      %c0_13 = arith.constant 0 : index
      %c0_14 = arith.constant 0 : index
      %21 = vector.load %arg4[%c0_13, %c0_14] : memref<1x128xf32, #tpu.memory_space<vmem>>, vector<1x128xf32>
      %22 = vector.broadcast %21 : vector<1x128xf32> to vector<4x128xf32>
      %23 = arith.addf %20, %22 : vector<4x128xf32>
      %cst_15 = arith.constant 0.000000e+00 : f32
      %24 = vector.broadcast %cst_15 : f32 to vector<4x128xf32>
      %25 = arith.maximumf %23, %24 : vector<4x128xf32>
      %c0_16 = arith.constant 0 : index
      %c0_17 = arith.constant 0 : index
      %c0_18 = arith.constant 0 : index
      %26 = vector.load %arg5[%c0_16, %c0_17, %c0_18] : memref<1x4x128xf32, #tpu.memory_space<vmem>>, vector<1x4x128xf32>
      %27 = vector.shape_cast %26 : vector<1x4x128xf32> to vector<4x128xf32>
      %28 = vector.shape_cast %25 : vector<4x128xf32> to vector<1x4x128xf32>
      tpu.vector_store %arg5[%c0_16, %c0_17, %c0_18], %28 {strides = array<i32>} : memref<1x4x128xf32, #tpu.memory_space<vmem>>, vector<1x4x128xf32>,
    } else {
    }
    return
  }
  func.func @transform_0(%arg0: i32, %arg1: i32) -> (i32, i32, i32) {
    %c0_i32 = arith.constant 0 : i32
    %c0_i32_0 = arith.constant 0 : i32
    return %arg0, %c0_i32, %arg1 : i32, i32, i32
  }
  func.func @transform_1(%arg0: i32, %arg1: i32) -> (i32, i32) {
    %c0_i32 = arith.constant 0 : i32
    %c0_i32_0 = arith.constant 0 : i32
    return %arg1, %c0_i32 : i32, i32
  }
  func.func @transform_2(%arg0: i32, %arg1: i32) -> (i32, i32) {
    %c0_i32 = arith.constant 0 : i32
    %c0_i32_0 = arith.constant 0 : i32
    %c0_i32_1 = arith.constant 0 : i32
    return %c0_i32, %c0_i32_0 : i32, i32
  }
  func.func @transform_3(%arg0: i32, %arg1: i32) -> (i32, i32, i32) {
    %c0_i32 = arith.constant 0 : i32
    %c0_i32_0 = arith.constant 0 : i32
    %c0_i32_1 = arith.constant 0 : i32
    return %arg0, %c0_i32, %c0_i32_0 : i32, i32, i32
  }
}

</mosaic_0001>

<llo_original>
// kernel: contra_module_forward.1
$region0: #{contra_module_forward.1}
  #allocation0 [shape = 'u32[]', space=smem, size = 0x4, offset = 0x4, fixed_abs, tag = 'smem constant byte address 0x4 - core index']
  #allocation1 [shape = 'u32[144,128]{1,0:T(1,128)}', space=vmem, size = 0x12000, scoped, tag = 'internal scratch']
  #allocation2 [shape = 'f32[4,128]{1,0:T(4,128)}', space=vmem, size = 0x800, scoped, tag = 'scratch operand']
  %s0 = inlined_call_operand.vmem [shape: bf16[2,4,16384], index: 0, kind: input, shape index: {}]
  %s1 = inlined_call_operand.vmem [shape: bf16[16384,128], index: 1, kind: input, shape index: {}]
  %s2 = inlined_call_operand.vmem [shape: f32[1,128], index: 2, kind: input, shape index: {}]
  %s3 = inlined_call_operand.hbm [shape: f32[2,4,128], index: 3, kind: output, shape index: {}]
  %s4 = sld [smem:[#allocation0]]
  $region53: #{contra_module_forward.1} parent=0
    _
  %s6 = ssub.s32 1, %s4
  %s7 = scalar_select 0, %s6, %s4
  $region1: #{contra_module_forward.1} parent=0
    #allocation3 [shape = 'u8[4096]{0}', space=vmem, size = 0x1000, scoped, tag = 'output window, operand 0']
    #allocation4 [shape = 's32[2]{0}', space=sflag, size = 0x8, scoped, tag = 'scoped memory for contra_module_forward.1']
    %8 = vsyncpa [#allocation4], 0
    %s9 = scalar_lea.sflag [#allocation4], 1
    %10 = vsyncpa %s9, 0
    loop: start=0, step=1, limit=10
    $region2: #{contra_module_forward.1} parent=1 // loop_pre_header
      _
    $region3: #{contra_module_forward.1} parent=1 // loop_header
      %s12 = sphi 0, %s16
      %p13 = scmp.ge.s32.totalorder %s12, 10
      %s19 = sphi 0, %s31
      %s20 = sphi 0, %s27
      %s21 = sphi 0, %s19
      %s22 = sphi 0, %s20
      %s23 = sphi 0, %s21
      %s24 = sphi 0, %s22
      %s36 = sphi 0, %s38
      %s39 = sphi 0, %s36
      %s40 = sphi 0, %s39
      %s56 = sphi 0, %s40
      %s62 = sphi 0, %s64
      %s65 = sphi 0, %s62
      %s66 = sphi 0, %s65
      %s82 = sphi 0, %s66
      %s86 = sphi 0, %s86
      %s88 = sphi 0, %s86
      %s89 = sphi 0, %s88
      %s103 = sphi 0, %s89
      %s109 = sphi 0, %s111
      %s112 = sphi 0, %s109
      %s113 = sphi 0, %s112
      %s129 = sphi 0, %s113
    $region4: #{contra_module_forward.1} parent=1 // loop_header_branch
      %15 = sbr.rel (%p13) target = $region8
    $region5: #{contra_module_forward.1} parent=1 // loop_body
      %s17 = ssub.s32 %s12, 1
      %s18 = ssub.s32 %s12, 2
      %s25 = sadd.s32 1, %s20
      %p26 = scmp.ge.s32.totalorder %s25, 4
      %s27 = scalar_select %p26, 0, %s25
      %s28 = sadd.s32 1, %s19
      %s29 = scalar_select %p26, %s28, %s19
      %p30 = scmp.ge.s32.totalorder %s29, 2
      %s31 = scalar_select %p30, 0, %s29
      %s32 = ssub.s32 %s19, %s31
      %s33 = ssub.s32 %s20, %s27
      %s34 = sor.u32 %s32, %s33
      %p35 = scmp.eq.s32.totalorder %s34, 0
      %s37 = sadd.s32 %s36, 1
      %s38 = scalar_select %p35, %s36, %s37
      %p41 = pneg %p35
      %p42 = scmp.eq.s32.totalorder %s12, 7
      %p43 = por %p41, %p42
      %p44 = scmp.ne.s32.totalorder %s36, %s39
      %p45 = scmp.eq.s32.totalorder %s12, 0
      %p46 = por %p44, %p45
      %p47 = scmp.ne.s32.totalorder %s36, %s39
      %p48 = scmp.eq.s32.totalorder %s17, 7
      %p49 = por %p47, %p48
      %p50 = scmp.ne.s32.totalorder %s39, %s40
      %p51 = scmp.eq.s32.totalorder %s17, 0
      %p52 = por %p50, %p51
      %p53 = scmp.ne.s32.totalorder %s39, %s40
      %p54 = scmp.eq.s32.totalorder %s18, 7
      %p55 = por %p53, %p54
      %p57 = scmp.ne.s32.totalorder %s40, %s56
      %p58 = scmp.eq.s32.totalorder %s18, 0
      %p59 = por %p57, %p58
      %s60 = ssub.s32 %s20, %s27
      %p61 = scmp.eq.s32.totalorder %s60, 0
      %s63 = sadd.s32 %s62, 1
      %s64 = scalar_select %p61, %s62, %s63
      %p67 = pneg %p61
      %p68 = scmp.eq.s32.totalorder %s12, 7
      %p69 = por %p67, %p68
      %p70 = scmp.ne.s32.totalorder %s62, %s65
      %p71 = scmp.eq.s32.totalorder %s12, 0
      %p72 = por %p70, %p71
      %p73 = scmp.ne.s32.totalorder %s62, %s65
      %p74 = scmp.eq.s32.totalorder %s17, 7
      %p75 = por %p73, %p74
      %p76 = scmp.ne.s32.totalorder %s65, %s66
      %p77 = scmp.eq.s32.totalorder %s17, 0
      %p78 = por %p76, %p77
      %p79 = scmp.ne.s32.totalorder %s65, %s66
      %p80 = scmp.eq.s32.totalorder %s18, 7
      %p81 = por %p79, %p80
      %p83 = scmp.ne.s32.totalorder %s66, %s82
      %p84 = scmp.eq.s32.totalorder %s18, 0
      %p85 = por %p83, %p84
      %s87 = sadd.s32 %s86, 1
      %p90 = scmp.eq.s32.totalorder %s12, 7
      %p91 = scmp.ne.s32.totalorder %s86, %s88
      %p92 = scmp.eq.s32.totalorder %s12, 0
      %p93 = por %p91, %p92
      %p94 = scmp.ne.s32.totalorder %s86, %s88
      %p95 = scmp.eq.s32.totalorder %s17, 7
      %p96 = por %p94, %p95
      %p97 = scmp.ne.s32.totalorder %s88, %s89
      %p98 = scmp.eq.s32.totalorder %s17, 0
      %p99 = por %p97, %p98
      %p100 = scmp.ne.s32.totalorder %s88, %s89
      %p101 = scmp.eq.s32.totalorder %s18, 7
      %p102 = por %p100, %p101
      %p104 = scmp.ne.s32.totalorder %s89, %s103
      %p105 = scmp.eq.s32.totalorder %s18, 0
      %p106 = por %p104, %p105
      %s107 = ssub.s32 %s19, %s31
      %p108 = scmp.eq.s32.totalorder %s107, 0
      %s110 = sadd.s32 %s109, 1
      %s111 = scalar_select %p108, %s109, %s110
      %p114 = pneg %p108
      %p115 = scmp.eq.s32.totalorder %s12, 7
      %p116 = por %p114, %p115
      %p117 = scmp.ne.s32.totalorder %s109, %s112
      %p118 = scmp.eq.s32.totalorder %s12, 0
      %p119 = por %p117, %p118
      %p120 = scmp.ne.s32.totalorder %s109, %s112
      %p121 = scmp.eq.s32.totalorder %s17, 7
      %p122 = por %p120, %p121
      %p123 = scmp.ne.s32.totalorder %s112, %s113
      %p124 = scmp.eq.s32.totalorder %s17, 0
      %p125 = por %p123, %p124
      %p126 = scmp.ne.s32.totalorder %s112, %s113
      %p127 = scmp.eq.s32.totalorder %s18, 7
      %p128 = por %p126, %p127
      %p130 = scmp.ne.s32.totalorder %s113, %s129
      %p131 = scmp.eq.s32.totalorder %s18, 0
      %p132 = por %p130, %p131
      %p133 = scmp.le.s32.totalorder 1, %s12
      %p134 = scmp.lt.s32.totalorder %s12, 9
      %p135 = pnand %p133, %p134
      %p136 = pneg %p135
      // Predicated region
      $region9: #{contra_module_forward.1} parent=5 // pred_check
        _
      $region10: #{contra_module_forward.1} parent=5 // pred_check_branch
        %138 = sbr.rel (%p135) target = $region12
      $region11: #{contra_module_forward.1} parent=5 // pred_region
        %s139 = ssub.s32 %s12, 1
        // Predicated region
        $region13: #{contra_module_forward.1} parent=11 // pred_check
          %p140 = pneg %p99
        $region14: #{contra_module_forward.1} parent=11 // pred_check_branch
          %142 = sbr.rel (%p140) target = $region16
        $region15: #{contra_module_forward.1} parent=11 // pred_region
          _
        $region16: #{contra_module_forward.1} parent=11 // pred_fallthru
          _
      $region12: #{contra_module_forward.1} parent=5 // pred_fallthru
        _
      %p143 = scmp.lt.s32.totalorder %s12, 8
      // Predicated region
      $region17: #{contra_module_forward.1} parent=5 // pred_check
        %p144 = pneg %p143
      $region18: #{contra_module_forward.1} parent=5 // pred_check_branch
        %146 = sbr.rel (%p144) target = $region20
      $region19: #{contra_module_forward.1} parent=5 // pred_region
        // Predicated region
        $region21: #{contra_module_forward.1} parent=19 // pred_check
          %p147 = pneg %p46
        $region22: #{contra_module_forward.1} parent=19 // pred_check_branch
          %149 = sbr.rel (%p147) target = $region24
        $region23: #{contra_module_forward.1} parent=19 // pred_region
          %s150 = smul.u32 32, %s20
          %p151 = scmp.lt.s32.totalorder %s19, 1
          %s152 = scalar_select %p151, %s19, 1
          %p153 = scmp.lt.s32.totalorder %s150, 127
          %s154 = scalar_select %p153, %s150, 127
          %s155 = smul.addr %s152, 128
          %s156 = sadd.s32 %s154, %s155
          %s157 = smul.addr %s156, 2
          %s158 = scalar_lea.vmem %s0, %s157
          %s159 = smul.u32 32, %s20
        $region24: #{contra_module_forward.1} parent=19 // pred_fallthru
          _
        // Predicated region
        $region25: #{contra_module_forward.1} parent=19 // pred_check
          %p160 = pneg %p72
        $region26: #{contra_module_forward.1} parent=19 // pred_check_branch
          %162 = sbr.rel (%p160) target = $region28
        $region27: #{contra_module_forward.1} parent=19 // pred_region
          %s163 = smul.u32 512, %s20
          %p164 = scmp.lt.s32.totalorder %s163, 2047
          %s165 = scalar_select %p164, %s163, 2047
          %s166 = smul.addr %s165, 4
          %s167 = scalar_lea.vmem %s1, %s166
          %s168 = smul.u32 512, %s20
        $region28: #{contra_module_forward.1} parent=19 // pred_fallthru
          _
      $region20: #{contra_module_forward.1} parent=5 // pred_fallthru
        _
      %p169 = scmp.le.s32.totalorder 1, %s12
      %p170 = scmp.lt.s32.totalorder %s12, 9
      %p171 = pnand %p169, %p170
      %p172 = pneg %p171
      // Predicated region
      $region29: #{contra_module_forward.1} parent=5 // pred_check
        _
      $region30: #{contra_module_forward.1} parent=5 // pred_check_branch
        %174 = sbr.rel (%p171) target = $region32
      $region31: #{contra_module_forward.1} parent=5 // pred_region
        %s175 = ssub.s32 %s12, 1
        %s176 = smul.u32 32, %s22
        %p177 = scmp.lt.s32.totalorder %s21, 1
        %s178 = scalar_select %p177, %s21, 1
        %p179 = scmp.lt.s32.totalorder %s176, 127
        %s180 = scalar_select %p179, %s176, 127
        %s181 = smul.addr %s178, 128
        %s182 = sadd.s32 %s180, %s181
        %s183 = smul.addr %s182, 2
        %s184 = scalar_lea.vmem %s0, %s183
        %p185 = pneg %p52
        %p186 = pneg %p49
        %s187 = smul.u32 512, %s22
        %p188 = scmp.lt.s32.totalorder %s187, 2047
        %s189 = scalar_select %p188, %s187, 2047
        %s190 = smul.addr %s189, 4
        %s191 = scalar_lea.vmem %s1, %s190
        %p192 = pneg %p78
        %p193 = pneg %p75
        %p194 = pneg %p99
        %p195 = pneg %p96
        %p196 = pneg %p125
        %p197 = pneg %p122
        %s198 = sand.u32 %s112, 1
        %s199 = scalar_lea.sflag [#allocation4], %s198
        %s200 = sand.u32 %s112, 1
        %s201 = smul.addr %s200, 4
        %s202 = scalar_lea.vmem [#allocation3], %s201
        %s203 = smul.u32 32, %s22
        %p204 = scmp.lt.s32.totalorder %s21, 1
        %s205 = scalar_select %p204, %s21, 1
        %p206 = scmp.lt.s32.totalorder %s203, 127
        %s207 = scalar_select %p206, %s203, 127
        %s208 = smul.addr %s205, 128
        %s209 = sadd.s32 %s207, %s208
        %s210 = smul.addr %s209, 2
        %s211 = scalar_lea.vmem %s0, %s210
        %s212 = smul.u32 32, %s22
        %s213 = smul.u32 512, %s22
        %p214 = scmp.lt.s32.totalorder %s213, 2047
        %s215 = scalar_select %p214, %s213, 2047
        %s216 = smul.addr %s215, 4
        %s217 = scalar_lea.vmem %s1, %s216
        %s218 = smul.u32 512, %s22
        %p220 = scmp.eq.s32.totalorder %s22, 0
        // Predicated region
        $region33: #{contra_module_forward.1} parent=31 // pred_check
          %p221 = pneg %p220
        $region34: #{contra_module_forward.1} parent=31 // pred_check_branch
          %223 = sbr.rel (%p221) target = $region36
        $region35: #{contra_module_forward.1} parent=31 // pred_region
          %224 = vst [vmem:[#allocation2] sm:$0xf] 0.0
        $region36: #{contra_module_forward.1} parent=31 // pred_fallthru
          _
        %v225 = vld [vmem:[%s211] sm:$0xff]
        %v226 = vld [vmem:[%s211 + $0x8] sm:$0xff]
        %v227 = vld [vmem:[%s211 + $0x10] sm:$0xff]
        %v228 = vld [vmem:[%s211 + $0x18] sm:$0xff]
        %v229 = vld [vmem:[%s211 + $0x20] sm:$0xff]
        %v230 = vld [vmem:[%s211 + $0x28] sm:$0xff]
        %v231 = vld [vmem:[%s211 + $0x30] sm:$0xff]
        %v232 = vld [vmem:[%s211 + $0x38] sm:$0xff]
        %v233 = vunpack.c.l.bf16 %v225
        %v234 = vunpack.c.h.bf16 %v225
        %v235 = vunpack.c.l.bf16 %v226
        %v236 = vunpack.c.h.bf16 %v226
        %v237 = vunpack.c.l.bf16 %v227
        %v238 = vunpack.c.h.bf16 %v227
        %v239 = vunpack.c.l.bf16 %v228
        %v240 = vunpack.c.h.bf16 %v228
        %v241 = vunpack.c.l.bf16 %v229
        %v242 = vunpack.c.h.bf16 %v229
        %v243 = vunpack.c.l.bf16 %v230
        %v244 = vunpack.c.h.bf16 %v230
        %v245 = vunpack.c.l.bf16 %v231
        %v246 = vunpack.c.h.bf16 %v231
        %v247 = vunpack.c.l.bf16 %v232
        %v248 = vunpack.c.h.bf16 %v232
        %v249 = vxor.u32 %v233, 2147483648
        %v250 = vxor.u32 %v234, 2147483648
        %v251 = vxor.u32 %v235, 2147483648
        %v252 = vxor.u32 %v236, 2147483648
        %v253 = vxor.u32 %v237, 2147483648
        %v254 = vxor.u32 %v238, 2147483648
        %v255 = vxor.u32 %v239, 2147483648
        %v256 = vxor.u32 %v240, 2147483648
        %v257 = vxor.u32 %v241, 2147483648
        %v258 = vxor.u32 %v242, 2147483648
        %v259 = vxor.u32 %v243, 2147483648
        %v260 = vxor.u32 %v244, 2147483648
        %v261 = vxor.u32 %v245, 2147483648
        %v262 = vxor.u32 %v246, 2147483648
        %v263 = vxor.u32 %v247, 2147483648
        %v264 = vxor.u32 %v248, 2147483648
        %v265 = vmul.f32 %v249, 1.442695
        %v266 = vpow.pop %v265
        %v267 = vmul.f32 %v250, 1.442695
        %v268 = vpow.pop %v267
        %v269 = vmul.f32 %v251, 1.442695
        %v270 = vpow.pop %v269
        %v271 = vmul.f32 %v252, 1.442695
        %v272 = vpow.pop %v271
        %v273 = vmul.f32 %v253, 1.442695
        %v274 = vpow.pop %v273
        %v275 = vmul.f32 %v254, 1.442695
        %v276 = vpow.pop %v275
        %v277 = vmul.f32 %v255, 1.442695
        %v278 = vpow.pop %v277
        %v279 = vmul.f32 %v256, 1.442695
        %v280 = vpow.pop %v279
        %v281 = vmul.f32 %v257, 1.442695
        %v282 = vpow.pop %v281
        %v283 = vmul.f32 %v258, 1.442695
        %v284 = vpow.pop %v283
        %v285 = vmul.f32 %v259, 1.442695
        %v286 = vpow.pop %v285
        %v287 = vmul.f32 %v260, 1.442695
        %v288 = vpow.pop %v287
        %v289 = vmul.f32 %v261, 1.442695
        %v290 = vpow.pop %v289
        %v291 = vmul.f32 %v262, 1.442695
        %v292 = vpow.pop %v291
        %v293 = vmul.f32 %v263, 1.442695
        %v294 = vpow.pop %v293
        %v295 = vmul.f32 %v264, 1.442695
        %v296 = vpow.pop %v295
        %v297 = vadd.f32 %v266, 1.0
        %v298 = vadd.f32 %v268, 1.0
        %v299 = vadd.f32 %v270, 1.0
        %v300 = vadd.f32 %v272, 1.0
        %v301 = vadd.f32 %v274, 1.0
        %v302 = vadd.f32 %v276, 1.0
        %v303 = vadd.f32 %v278, 1.0
        %v304 = vadd.f32 %v280, 1.0
        %v305 = vadd.f32 %v282, 1.0
        %v306 = vadd.f32 %v284, 1.0
        %v307 = vadd.f32 %v286, 1.0
        %v308 = vadd.f32 %v288, 1.0
        %v309 = vadd.f32 %v290, 1.0
        %v310 = vadd.f32 %v292, 1.0
        %v311 = vadd.f32 %v294, 1.0
        %v312 = vadd.f32 %v296, 1.0
        %v313 = vrcp.pop %v297
        %v314 = vmul.f32 1.0, %v313
        %v315 = vrcp.pop %v298
        %v316 = vmul.f32 1.0, %v315
        %v317 = vrcp.pop %v299
        %v318 = vmul.f32 1.0, %v317
        %v319 = vrcp.pop %v300
        %v320 = vmul.f32 1.0, %v319
        %v321 = vrcp.pop %v301
        %v322 = vmul.f32 1.0, %v321
        %v323 = vrcp.pop %v302
        %v324 = vmul.f32 1.0, %v323
        %v325 = vrcp.pop %v303
        %v326 = vmul.f32 1.0, %v325
        %v327 = vrcp.pop %v304
        %v328 = vmul.f32 1.0, %v327
        %v329 = vrcp.pop %v305
        %v330 = vmul.f32 1.0, %v329
        %v331 = vrcp.pop %v306
        %v332 = vmul.f32 1.0, %v331
        %v333 = vrcp.pop %v307
        %v334 = vmul.f32 1.0, %v333
        %v335 = vrcp.pop %v308
        %v336 = vmul.f32 1.0, %v335
        %v337 = vrcp.pop %v309
        %v338 = vmul.f32 1.0, %v337
        %v339 = vrcp.pop %v310
        %v340 = vmul.f32 1.0, %v339
        %v341 = vrcp.pop %v311
        %v342 = vmul.f32 1.0, %v341
        %v343 = vrcp.pop %v312
        %v344 = vmul.f32 1.0, %v343
        %v345 = vld [vmem:[#allocation2] sm:$0xf]
        %v362 = vcombine.high %v314, %v314
        %v363 = vcombine.high %v316, %v316
        %v364 = vcombine.high %v318, %v318
        %v365 = vcombine.high %v320, %v320
        %v366 = vcombine.high %v322, %v322
        %v367 = vcombine.high %v324, %v324
        %v368 = vcombine.high %v326, %v326
        %v369 = vcombine.high %v328, %v328
        %v370 = vcombine.high %v330, %v330
        %v371 = vcombine.high %v332, %v332
        %v372 = vcombine.high %v334, %v334
        %v373 = vcombine.high %v336, %v336
        %v374 = vcombine.high %v338, %v338
        %v375 = vcombine.high %v340, %v340
        %v376 = vcombine.high %v342, %v342
        %v377 = vcombine.high %v344, %v344
        %v394 = vpack.c.bf16 %v314, %v314
        %v395 = vpack.c.bf16 %v362, %v362
        %v396 = vpack.c.bf16 %v316, %v316
        %v397 = vpack.c.bf16 %v363, %v363
        %v398 = vpack.c.bf16 %v318, %v318
        %v399 = vpack.c.bf16 %v364, %v364
        %v400 = vpack.c.bf16 %v320, %v320
        %v401 = vpack.c.bf16 %v365, %v365
        %v402 = vpack.c.bf16 %v322, %v322
        %v403 = vpack.c.bf16 %v366, %v366
        %v404 = vpack.c.bf16 %v324, %v324
        %v405 = vpack.c.bf16 %v367, %v367
        %v406 = vpack.c.bf16 %v326, %v326
        %v407 = vpack.c.bf16 %v368, %v368
        %v408 = vpack.c.bf16 %v328, %v328
        %v409 = vpack.c.bf16 %v369, %v369
        %v410 = vpack.c.bf16 %v330, %v330
        %v411 = vpack.c.bf16 %v370, %v370
        %v412 = vpack.c.bf16 %v332, %v332
        %v413 = vpack.c.bf16 %v371, %v371
        %v414 = vpack.c.bf16 %v334, %v334
        %v415 = vpack.c.bf16 %v372, %v372
        %v416 = vpack.c.bf16 %v336, %v336
        %v417 = vpack.c.bf16 %v373, %v373
        %v418 = vpack.c.bf16 %v338, %v338
        %v419 = vpack.c.bf16 %v374, %v374
        %v420 = vpack.c.bf16 %v340, %v340
        %v421 = vpack.c.bf16 %v375, %v375
        %v422 = vpack.c.bf16 %v342, %v342
        %v423 = vpack.c.bf16 %v376, %v376
        %v424 = vpack.c.bf16 %v344, %v344
        %v425 = vpack.c.bf16 %v377, %v377
        %v426 = vld [vmem:[%s217] sm:$0xf]
        %v427 = vld [vmem:[%s217 + $0x4] sm:$0xf]
        %v428 = vld [vmem:[%s217 + $0x8] sm:$0xf]
        %v429 = vld [vmem:[%s217 + $0xc] sm:$0xf]
        %v430 = vld [vmem:[%s217 + $0x10] sm:$0xf]
        %v431 = vld [vmem:[%s217 + $0x14] sm:$0xf]
        %v432 = vld [vmem:[%s217 + $0x18] sm:$0xf]
        %v433 = vld [vmem:[%s217 + $0x1c] sm:$0xf]
        %v434 = vld [vmem:[%s217 + $0x20] sm:$0xf]
        %v435 = vld [vmem:[%s217 + $0x24] sm:$0xf]
        %v436 = vld [vmem:[%s217 + $0x28] sm:$0xf]
        %v437 = vld [vmem:[%s217 + $0x2c] sm:$0xf]
        %v438 = vld [vmem:[%s217 + $0x30] sm:$0xf]
        %v439 = vld [vmem:[%s217 + $0x34] sm:$0xf]
        %v440 = vld [vmem:[%s217 + $0x38] sm:$0xf]
        %v441 = vld [vmem:[%s217 + $0x3c] sm:$0xf]
        %v442 = vld [vmem:[%s217 + $0x40] sm:$0xf]
        %v443 = vld [vmem:[%s217 + $0x44] sm:$0xf]
        %v444 = vld [vmem:[%s217 + $0x48] sm:$0xf]
        %v445 = vld [vmem:[%s217 + $0x4c] sm:$0xf]
        %v446 = vld [vmem:[%s217 + $0x50] sm:$0xf]
        %v447 = vld [vmem:[%s217 + $0x54] sm:$0xf]
        %v448 = vld [vmem:[%s217 + $0x58] sm:$0xf]
        %v449 = vld [vmem:[%s217 + $0x5c] sm:$0xf]
        %v450 = vld [vmem:[%s217 + $0x60] sm:$0xf]
        %v451 = vld [vmem:[%s217 + $0x64] sm:$0xf]
        %v452 = vld [vmem:[%s217 + $0x68] sm:$0xf]
        %v453 = vld [vmem:[%s217 + $0x6c] sm:$0xf]
        %v454 = vld [vmem:[%s217 + $0x70] sm:$0xf]
        %v455 = vld [vmem:[%s217 + $0x74] sm:$0xf]
        %v456 = vld [vmem:[%s217 + $0x78] sm:$0xf]
        %v457 = vld [vmem:[%s217 + $0x7c] sm:$0xf]
        %v458 = vld [vmem:[%s217 + $0x80] sm:$0xf]
        %v459 = vld [vmem:[%s217 + $0x84] sm:$0xf]
        %v460 = vld [vmem:[%s217 + $0x88] sm:$0xf]
        %v461 = vld [vmem:[%s217 + $0x8c] sm:$0xf]
        %v462 = vld [vmem:[%s217 + $0x90] sm:$0xf]
        %v463 = vld [vmem:[%s217 + $0x94] sm:$0xf]
        %v464 = vld [vmem:[%s217 + $0x98] sm:$0xf]
        %v465 = vld [vmem:[%s217 + $0x9c] sm:$0xf]
        %v466 = vld [vmem:[%s217 + $0xa0] sm:$0xf]
        %v467 = vld [vmem:[%s217 + $0xa4] sm:$0xf]
        %v468 = vld [vmem:[%s217 + $0xa8] sm:$0xf]
        %v469 = vld [vmem:[%s217 + $0xac] sm:$0xf]
        %v470 = vld [vmem:[%s217 + $0xb0] sm:$0xf]
        %v471 = vld [vmem:[%s217 + $0xb4] sm:$0xf]
        %v472 = vld [vmem:[%s217 + $0xb8] sm:$0xf]
        %v473 = vld [vmem:[%s217 + $0xbc] sm:$0xf]
        %v474 = vld [vmem:[%s217 + $0xc0] sm:$0xf]
        %v475 = vld [vmem:[%s217 + $0xc4] sm:$0xf]
        %v476 = vld [vmem:[%s217 + $0xc8] sm:$0xf]
        %v477 = vld [vmem:[%s217 + $0xcc] sm:$0xf]
        %v478 = vld [vmem:[%s217 + $0xd0] sm:$0xf]
        %v479 = vld [vmem:[%s217 + $0xd4] sm:$0xf]
        %v480 = vld [vmem:[%s217 + $0xd8] sm:$0xf]
        %v481 = vld [vmem:[%s217 + $0xdc] sm:$0xf]
        %v482 = vld [vmem:[%s217 + $0xe0] sm:$0xf]
        %v483 = vld [vmem:[%s217 + $0xe4] sm:$0xf]
        %v484 = vld [vmem:[%s217 + $0xe8] sm:$0xf]
        %v485 = vld [vmem:[%s217 + $0xec] sm:$0xf]
        %v486 = vld [vmem:[%s217 + $0xf0] sm:$0xf]
        %v487 = vld [vmem:[%s217 + $0xf4] sm:$0xf]
        %v488 = vld [vmem:[%s217 + $0xf8] sm:$0xf]
        %v489 = vld [vmem:[%s217 + $0xfc] sm:$0xf]
        %v490 = vld [vmem:[%s217 + $0x100] sm:$0xf]
        %v491 = vld [vmem:[%s217 + $0x104] sm:$0xf]
        %v492 = vld [vmem:[%s217 + $0x108] sm:$0xf]
        %v493 = vld [vmem:[%s217 + $0x10c] sm:$0xf]
        %v494 = vld [vmem:[%s217 + $0x110] sm:$0xf]
        %v495 = vld [vmem:[%s217 + $0x114] sm:$0xf]
        %v496 = vld [vmem:[%s217 + $0x118] sm:$0xf]
        %v497 = vld [vmem:[%s217 + $0x11c] sm:$0xf]
        %v498 = vld [vmem:[%s217 + $0x120] sm:$0xf]
        %v499 = vld [vmem:[%s217 + $0x124] sm:$0xf]
        %v500 = vld [vmem:[%s217 + $0x128] sm:$0xf]
        %v501 = vld [vmem:[%s217 + $0x12c] sm:$0xf]
        %v502 = vld [vmem:[%s217 + $0x130] sm:$0xf]
        %v503 = vld [vmem:[%s217 + $0x134] sm:$0xf]
        %v504 = vld [vmem:[%s217 + $0x138] sm:$0xf]
        %v505 = vld [vmem:[%s217 + $0x13c] sm:$0xf]
        %v506 = vld [vmem:[%s217 + $0x140] sm:$0xf]
        %v507 = vld [vmem:[%s217 + $0x144] sm:$0xf]
        %v508 = vld [vmem:[%s217 + $0x148] sm:$0xf]
        %v509 = vld [vmem:[%s217 + $0x14c] sm:$0xf]
        %v510 = vld [vmem:[%s217 + $0x150] sm:$0xf]
        %v511 = vld [vmem:[%s217 + $0x154] sm:$0xf]
        %v512 = vld [vmem:[%s217 + $0x158] sm:$0xf]
        %v513 = vld [vmem:[%s217 + $0x15c] sm:$0xf]
        %v514 = vld [vmem:[%s217 + $0x160] sm:$0xf]
        %v515 = vld [vmem:[%s217 + $0x164] sm:$0xf]
        %v516 = vld [vmem:[%s217 + $0x168] sm:$0xf]
        %v517 = vld [vmem:[%s217 + $0x16c] sm:$0xf]
        %v518 = vld [vmem:[%s217 + $0x170] sm:$0xf]
        %v519 = vld [vmem:[%s217 + $0x174] sm:$0xf]
        %v520 = vld [vmem:[%s217 + $0x178] sm:$0xf]
        %v521 = vld [vmem:[%s217 + $0x17c] sm:$0xf]
        %v522 = vld [vmem:[%s217 + $0x180] sm:$0xf]
        %v523 = vld [vmem:[%s217 + $0x184] sm:$0xf]
        %v524 = vld [vmem:[%s217 + $0x188] sm:$0xf]
        %v525 = vld [vmem:[%s217 + $0x18c] sm:$0xf]
        %v526 = vld [vmem:[%s217 + $0x190] sm:$0xf]
        %v527 = vld [vmem:[%s217 + $0x194] sm:$0xf]
        %v528 = vld [vmem:[%s217 + $0x198] sm:$0xf]
        %v529 = vld [vmem:[%s217 + $0x19c] sm:$0xf]
        %v530 = vld [vmem:[%s217 + $0x1a0] sm:$0xf]
        %v531 = vld [vmem:[%s217 + $0x1a4] sm:$0xf]
        %v532 = vld [vmem:[%s217 + $0x1a8] sm:$0xf]
        %v533 = vld [vmem:[%s217 + $0x1ac] sm:$0xf]
        %v534 = vld [vmem:[%s217 + $0x1b0] sm:$0xf]
        %v535 = vld [vmem:[%s217 + $0x1b4] sm:$0xf]
        %v536 = vld [vmem:[%s217 + $0x1b8] sm:$0xf]
        %v537 = vld [vmem:[%s217 + $0x1bc] sm:$0xf]
        %v538 = vld [vmem:[%s217 + $0x1c0] sm:$0xf]
        %v539 = vld [vmem:[%s217 + $0x1c4] sm:$0xf]
        %v540 = vld [vmem:[%s217 + $0x1c8] sm:$0xf]
        %v541 = vld [vmem:[%s217 + $0x1cc] sm:$0xf]
        %v542 = vld [vmem:[%s217 + $0x1d0] sm:$0xf]
        %v543 = vld [vmem:[%s217 + $0x1d4] sm:$0xf]
        %v544 = vld [vmem:[%s217 + $0x1d8] sm:$0xf]
        %v545 = vld [vmem:[%s217 + $0x1dc] sm:$0xf]
        %v546 = vld [vmem:[%s217 + $0x1e0] sm:$0xf]
        %v547 = vld [vmem:[%s217 + $0x1e4] sm:$0xf]
        %v548 = vld [vmem:[%s217 + $0x1e8] sm:$0xf]
        %v549 = vld [vmem:[%s217 + $0x1ec] sm:$0xf]
        %v550 = vld [vmem:[%s217 + $0x1f0] sm:$0xf]
        %v551 = vld [vmem:[%s217 + $0x1f4] sm:$0xf]
        %v552 = vld [vmem:[%s217 + $0x1f8] sm:$0xf]
        %v553 = vld [vmem:[%s217 + $0x1fc] sm:$0xf]
        %v554 = vld [vmem:[%s217 + $0x200] sm:$0xf]
        %v555 = vld [vmem:[%s217 + $0x204] sm:$0xf]
        %v556 = vld [vmem:[%s217 + $0x208] sm:$0xf]
        %v557 = vld [vmem:[%s217 + $0x20c] sm:$0xf]
        %v558 = vld [vmem:[%s217 + $0x210] sm:$0xf]
        %v559 = vld [vmem:[%s217 + $0x214] sm:$0xf]
        %v560 = vld [vmem:[%s217 + $0x218] sm:$0xf]
        %v561 = vld [vmem:[%s217 + $0x21c] sm:$0xf]
        %v562 = vld [vmem:[%s217 + $0x220] sm:$0xf]
        %v563 = vld [vmem:[%s217 + $0x224] sm:$0xf]
        %v564 = vld [vmem:[%s217 + $0x228] sm:$0xf]
        %v565 = vld [vmem:[%s217 + $0x22c] sm:$0xf]
        %v566 = vld [vmem:[%s217 + $0x230] sm:$0xf]
        %v567 = vld [vmem:[%s217 + $0x234] sm:$0xf]
        %v568 = vld [vmem:[%s217 + $0x238] sm:$0xf]
        %v569 = vld [vmem:[%s217 + $0x23c] sm:$0xf]
        %v570 = vld [vmem:[%s217 + $0x240] sm:$0xf]
        %v571 = vld [vmem:[%s217 + $0x244] sm:$0xf]
        %v572 = vld [vmem:[%s217 + $0x248] sm:$0xf]
        %v573 = vld [vmem:[%s217 + $0x24c] sm:$0xf]
        %v574 = vld [vmem:[%s217 + $0x250] sm:$0xf]
        %v575 = vld [vmem:[%s217 + $0x254] sm:$0xf]
        %v576 = vld [vmem:[%s217 + $0x258] sm:$0xf]
        %v577 = vld [vmem:[%s217 + $0x25c] sm:$0xf]
        %v578 = vld [vmem:[%s217 + $0x260] sm:$0xf]
        %v579 = vld [vmem:[%s217 + $0x264] sm:$0xf]
        %v580 = vld [vmem:[%s217 + $0x268] sm:$0xf]
        %v581 = vld [vmem:[%s217 + $0x26c] sm:$0xf]
        %v582 = vld [vmem:[%s217 + $0x270] sm:$0xf]
        %v583 = vld [vmem:[%s217 + $0x274] sm:$0xf]
        %v584 = vld [vmem:[%s217 + $0x278] sm:$0xf]
        %v585 = vld [vmem:[%s217 + $0x27c] sm:$0xf]
        %v586 = vld [vmem:[%s217 + $0x280] sm:$0xf]
        %v587 = vld [vmem:[%s217 + $0x284] sm:$0xf]
        %v588 = vld [vmem:[%s217 + $0x288] sm:$0xf]
        %v589 = vld [vmem:[%s217 + $0x28c] sm:$0xf]
        %v590 = vld [vmem:[%s217 + $0x290] sm:$0xf]
        %v591 = vld [vmem:[%s217 + $0x294] sm:$0xf]
        %v592 = vld [vmem:[%s217 + $0x298] sm:$0xf]
        %v593 = vld [vmem:[%s217 + $0x29c] sm:$0xf]
        %v594 = vld [vmem:[%s217 + $0x2a0] sm:$0xf]
        %v595 = vld [vmem:[%s217 + $0x2a4] sm:$0xf]
        %v596 = vld [vmem:[%s217 + $0x2a8] sm:$0xf]
        %v597 = vld [vmem:[%s217 + $0x2ac] sm:$0xf]
        %v598 = vld [vmem:[%s217 + $0x2b0] sm:$0xf]
        %v599 = vld [vmem:[%s217 + $0x2b4] sm:$0xf]
        %v600 = vld [vmem:[%s217 + $0x2b8] sm:$0xf]
        %v601 = vld [vmem:[%s217 + $0x2bc] sm:$0xf]
        %v602 = vld [vmem:[%s217 + $0x2c0] sm:$0xf]
        %v603 = vld [vmem:[%s217 + $0x2c4] sm:$0xf]
        %v604 = vld [vmem:[%s217 + $0x2c8] sm:$0xf]
        %v605 = vld [vmem:[%s217 + $0x2cc] sm:$0xf]
        %v606 = vld [vmem:[%s217 + $0x2d0] sm:$0xf]
        %v607 = vld [vmem:[%s217 + $0x2d4] sm:$0xf]
        %v608 = vld [vmem:[%s217 + $0x2d8] sm:$0xf]
        %v609 = vld [vmem:[%s217 + $0x2dc] sm:$0xf]
        %v610 = vld [vmem:[%s217 + $0x2e0] sm:$0xf]
        %v611 = vld [vmem:[%s217 + $0x2e4] sm:$0xf]
        %v612 = vld [vmem:[%s217 + $0x2e8] sm:$0xf]
        %v613 = vld [vmem:[%s217 + $0x2ec] sm:$0xf]
        %v614 = vld [vmem:[%s217 + $0x2f0] sm:$0xf]
        %v615 = vld [vmem:[%s217 + $0x2f4] sm:$0xf]
        %v616 = vld [vmem:[%s217 + $0x2f8] sm:$0xf]
        %v617 = vld [vmem:[%s217 + $0x2fc] sm:$0xf]
        %v618 = vld [vmem:[%s217 + $0x300] sm:$0xf]
        %v619 = vld [vmem:[%s217 + $0x304] sm:$0xf]
        %v620 = vld [vmem:[%s217 + $0x308] sm:$0xf]
        %v621 = vld [vmem:[%s217 + $0x30c] sm:$0xf]
        %v622 = vld [vmem:[%s217 + $0x310] sm:$0xf]
        %v623 = vld [vmem:[%s217 + $0x314] sm:$0xf]
        %v624 = vld [vmem:[%s217 + $0x318] sm:$0xf]
        %v625 = vld [vmem:[%s217 + $0x31c] sm:$0xf]
        %v626 = vld [vmem:[%s217 + $0x320] sm:$0xf]
        %v627 = vld [vmem:[%s217 + $0x324] sm:$0xf]
        %v628 = vld [vmem:[%s217 + $0x328] sm:$0xf]
        %v629 = vld [vmem:[%s217 + $0x32c] sm:$0xf]
        %v630 = vld [vmem:[%s217 + $0x330] sm:$0xf]
        %v631 = vld [vmem:[%s217 + $0x334] sm:$0xf]
        %v632 = vld [vmem:[%s217 + $0x338] sm:$0xf]
        %v633 = vld [vmem:[%s217 + $0x33c] sm:$0xf]
        %v634 = vld [vmem:[%s217 + $0x340] sm:$0xf]
        %v635 = vld [vmem:[%s217 + $0x344] sm:$0xf]
        %v636 = vld [vmem:[%s217 + $0x348] sm:$0xf]
        %v637 = vld [vmem:[%s217 + $0x34c] sm:$0xf]
        %v638 = vld [vmem:[%s217 + $0x350] sm:$0xf]
        %v639 = vld [vmem:[%s217 + $0x354] sm:$0xf]
        %v640 = vld [vmem:[%s217 + $0x358] sm:$0xf]
        %v641 = vld [vmem:[%s217 + $0x35c] sm:$0xf]
        %v642 = vld [vmem:[%s217 + $0x360] sm:$0xf]
        %v643 = vld [vmem:[%s217 + $0x364] sm:$0xf]
        %v644 = vld [vmem:[%s217 + $0x368] sm:$0xf]
        %v645 = vld [vmem:[%s217 + $0x36c] sm:$0xf]
        %v646 = vld [vmem:[%s217 + $0x370] sm:$0xf]
        %v647 = vld [vmem:[%s217 + $0x374] sm:$0xf]
        %v648 = vld [vmem:[%s217 + $0x378] sm:$0xf]
        %v649 = vld [vmem:[%s217 + $0x37c] sm:$0xf]
        %v650 = vld [vmem:[%s217 + $0x380] sm:$0xf]
        %v651 = vld [vmem:[%s217 + $0x384] sm:$0xf]
        %v652 = vld [vmem:[%s217 + $0x388] sm:$0xf]
        %v653 = vld [vmem:[%s217 + $0x38c] sm:$0xf]
        %v654 = vld [vmem:[%s217 + $0x390] sm:$0xf]
        %v655 = vld [vmem:[%s217 + $0x394] sm:$0xf]
        %v656 = vld [vmem:[%s217 + $0x398] sm:$0xf]
        %v657 = vld [vmem:[%s217 + $0x39c] sm:$0xf]
        %v658 = vld [vmem:[%s217 + $0x3a0] sm:$0xf]
        %v659 = vld [vmem:[%s217 + $0x3a4] sm:$0xf]
        %v660 = vld [vmem:[%s217 + $0x3a8] sm:$0xf]
        %v661 = vld [vmem:[%s217 + $0x3ac] sm:$0xf]
        %v662 = vld [vmem:[%s217 + $0x3b0] sm:$0xf]
        %v663 = vld [vmem:[%s217 + $0x3b4] sm:$0xf]
        %v664 = vld [vmem:[%s217 + $0x3b8] sm:$0xf]
        %v665 = vld [vmem:[%s217 + $0x3bc] sm:$0xf]
        %v666 = vld [vmem:[%s217 + $0x3c0] sm:$0xf]
        %v667 = vld [vmem:[%s217 + $0x3c4] sm:$0xf]
        %v668 = vld [vmem:[%s217 + $0x3c8] sm:$0xf]
        %v669 = vld [vmem:[%s217 + $0x3cc] sm:$0xf]
        %v670 = vld [vmem:[%s217 + $0x3d0] sm:$0xf]
        %v671 = vld [vmem:[%s217 + $0x3d4] sm:$0xf]
        %v672 = vld [vmem:[%s217 + $0x3d8] sm:$0xf]
        %v673 = vld [vmem:[%s217 + $0x3dc] sm:$0xf]
        %v674 = vld [vmem:[%s217 + $0x3e0] sm:$0xf]
        %v675 = vld [vmem:[%s217 + $0x3e4] sm:$0xf]
        %v676 = vld [vmem:[%s217 + $0x3e8] sm:$0xf]
        %v677 = vld [vmem:[%s217 + $0x3ec] sm:$0xf]
        %v678 = vld [vmem:[%s217 + $0x3f0] sm:$0xf]
        %v679 = vld [vmem:[%s217 + $0x3f4] sm:$0xf]
        %v680 = vld [vmem:[%s217 + $0x3f8] sm:$0xf]
        %v681 = vld [vmem:[%s217 + $0x3fc] sm:$0xf]
        %v682 = vld [vmem:[%s217 + $0x400] sm:$0xf]
        %v683 = vld [vmem:[%s217 + $0x404] sm:$0xf]
        %v684 = vld [vmem:[%s217 + $0x408] sm:$0xf]
        %v685 = vld [vmem:[%s217 + $0x40c] sm:$0xf]
        %v686 = vld [vmem:[%s217 + $0x410] sm:$0xf]
        %v687 = vld [vmem:[%s217 + $0x414] sm:$0xf]
        %v688 = vld [vmem:[%s217 + $0x418] sm:$0xf]
        %v689 = vld [vmem:[%s217 + $0x41c] sm:$0xf]
        %v690 = vld [vmem:[%s217 + $0x420] sm:$0xf]
        %v691 = vld [vmem:[%s217 + $0x424] sm:$0xf]
        %v692 = vld [vmem:[%s217 + $0x428] sm:$0xf]
        %v693 = vld [vmem:[%s217 + $0x42c] sm:$0xf]
        %v694 = vld [vmem:[%s217 + $0x430] sm:$0xf]
        %v695 = vld [vmem:[%s217 + $0x434] sm:$0xf]
        %v696 = vld [vmem:[%s217 + $0x438] sm:$0xf]
        %v697 = vld [vmem:[%s217 + $0x43c] sm:$0xf]
        %v698 = vld [vmem:[%s217 + $0x440] sm:$0xf]
        %v699 = vld [vmem:[%s217 + $0x444] sm:$0xf]
        %v700 = vld [vmem:[%s217 + $0x448] sm:$0xf]
        %v701 = vld [vmem:[%s217 + $0x44c] sm:$0xf]
        %v702 = vld [vmem:[%s217 + $0x450] sm:$0xf]
        %v703 = vld [vmem:[%s217 + $0x454] sm:$0xf]
        %v704 = vld [vmem:[%s217 + $0x458] sm:$0xf]
        %v705 = vld [vmem:[%s217 + $0x45c] sm:$0xf]
        %v706 = vld [vmem:[%s217 + $0x460] sm:$0xf]
        %v707 = vld [vmem:[%s217 + $0x464] sm:$0xf]
        %v708 = vld [vmem:[%s217 + $0x468] sm:$0xf]
        %v709 = vld [vmem:[%s217 + $0x46c] sm:$0xf]
        %v710 = vld [vmem:[%s217 + $0x470] sm:$0xf]
        %v711 = vld [vmem:[%s217 + $0x474] sm:$0xf]
        %v712 = vld [vmem:[%s217 + $0x478] sm:$0xf]
        %v713 = vld [vmem:[%s217 + $0x47c] sm:$0xf]
        %v714 = vld [vmem:[%s217 + $0x480] sm:$0xf]
        %v715 = vld [vmem:[%s217 + $0x484] sm:$0xf]
        %v716 = vld [vmem:[%s217 + $0x488] sm:$0xf]
        %v717 = vld [vmem:[%s217 + $0x48c] sm:$0xf]
        %v718 = vld [vmem:[%s217 + $0x490] sm:$0xf]
        %v719 = vld [vmem:[%s217 + $0x494] sm:$0xf]
        %v720 = vld [vmem:[%s217 + $0x498] sm:$0xf]
        %v721 = vld [vmem:[%s217 + $0x49c] sm:$0xf]
        %v722 = vld [vmem:[%s217 + $0x4a0] sm:$0xf]
        %v723 = vld [vmem:[%s217 + $0x4a4] sm:$0xf]
        %v724 = vld [vmem:[%s217 + $0x4a8] sm:$0xf]
        %v725 = vld [vmem:[%s217 + $0x4ac] sm:$0xf]
        %v726 = vld [vmem:[%s217 + $0x4b0] sm:$0xf]
        %v727 = vld [vmem:[%s217 + $0x4b4] sm:$0xf]
        %v728 = vld [vmem:[%s217 + $0x4b8] sm:$0xf]
        %v729 = vld [vmem:[%s217 + $0x4bc] sm:$0xf]
        %v730 = vld [vmem:[%s217 + $0x4c0] sm:$0xf]
        %v731 = vld [vmem:[%s217 + $0x4c4] sm:$0xf]
        %v732 = vld [vmem:[%s217 + $0x4c8] sm:$0xf]
        %v733 = vld [vmem:[%s217 + $0x4cc] sm:$0xf]
        %v734 = vld [vmem:[%s217 + $0x4d0] sm:$0xf]
        %v735 = vld [vmem:[%s217 + $0x4d4] sm:$0xf]
        %v736 = vld [vmem:[%s217 + $0x4d8] sm:$0xf]
        %v737 = vld [vmem:[%s217 + $0x4dc] sm:$0xf]
        %v738 = vld [vmem:[%s217 + $0x4e0] sm:$0xf]
        %v739 = vld [vmem:[%s217 + $0x4e4] sm:$0xf]
        %v740 = vld [vmem:[%s217 + $0x4e8] sm:$0xf]
        %v741 = vld [vmem:[%s217 + $0x4ec] sm:$0xf]
        %v742 = vld [vmem:[%s217 + $0x4f0] sm:$0xf]
        %v743 = vld [vmem:[%s217 + $0x4f4] sm:$0xf]
        %v744 = vld [vmem:[%s217 + $0x4f8] sm:$0xf]
        %v745 = vld [vmem:[%s217 + $0x4fc] sm:$0xf]
        %v746 = vld [vmem:[%s217 + $0x500] sm:$0xf]
        %v747 = vld [vmem:[%s217 + $0x504] sm:$0xf]
        %v748 = vld [vmem:[%s217 + $0x508] sm:$0xf]
        %v749 = vld [vmem:[%s217 + $0x50c] sm:$0xf]
        %v750 = vld [vmem:[%s217 + $0x510] sm:$0xf]
        %v751 = vld [vmem:[%s217 + $0x514] sm:$0xf]
        %v752 = vld [vmem:[%s217 + $0x518] sm:$0xf]
        %v753 = vld [vmem:[%s217 + $0x51c] sm:$0xf]
        %v754 = vld [vmem:[%s217 + $0x520] sm:$0xf]
        %v755 = vld [vmem:[%s217 + $0x524] sm:$0xf]
        %v756 = vld [vmem:[%s217 + $0x528] sm:$0xf]
        %v757 = vld [vmem:[%s217 + $0x52c] sm:$0xf]
        %v758 = vld [vmem:[%s217 + $0x530] sm:$0xf]
        %v759 = vld [vmem:[%s217 + $0x534] sm:$0xf]
        %v760 = vld [vmem:[%s217 + $0x538] sm:$0xf]
        %v761 = vld [vmem:[%s217 + $0x53c] sm:$0xf]
        %v762 = vld [vmem:[%s217 + $0x540] sm:$0xf]
        %v763 = vld [vmem:[%s217 + $0x544] sm:$0xf]
        %v764 = vld [vmem:[%s217 + $0x548] sm:$0xf]
        %v765 = vld [vmem:[%s217 + $0x54c] sm:$0xf]
        %v766 = vld [vmem:[%s217 + $0x550] sm:$0xf]
        %v767 = vld [vmem:[%s217 + $0x554] sm:$0xf]
        %v768 = vld [vmem:[%s217 + $0x558] sm:$0xf]
        %v769 = vld [vmem:[%s217 + $0x55c] sm:$0xf]
        %v770 = vld [vmem:[%s217 + $0x560] sm:$0xf]
        %v771 = vld [vmem:[%s217 + $0x564] sm:$0xf]
        %v772 = vld [vmem:[%s217 + $0x568] sm:$0xf]
        %v773 = vld [vmem:[%s217 + $0x56c] sm:$0xf]
        %v774 = vld [vmem:[%s217 + $0x570] sm:$0xf]
        %v775 = vld [vmem:[%s217 + $0x574] sm:$0xf]
        %v776 = vld [vmem:[%s217 + $0x578] sm:$0xf]
        %v777 = vld [vmem:[%s217 + $0x57c] sm:$0xf]
        %v778 = vld [vmem:[%s217 + $0x580] sm:$0xf]
        %v779 = vld [vmem:[%s217 + $0x584] sm:$0xf]
        %v780 = vld [vmem:[%s217 + $0x588] sm:$0xf]
        %v781 = vld [vmem:[%s217 + $0x58c] sm:$0xf]
        %v782 = vld [vmem:[%s217 + $0x590] sm:$0xf]
        %v783 = vld [vmem:[%s217 + $0x594] sm:$0xf]
        %v784 = vld [vmem:[%s217 + $0x598] sm:$0xf]
        %v785 = vld [vmem:[%s217 + $0x59c] sm:$0xf]
        %v786 = vld [vmem:[%s217 + $0x5a0] sm:$0xf]
        %v787 = vld [vmem:[%s217 + $0x5a4] sm:$0xf]
        %v788 = vld [vmem:[%s217 + $0x5a8] sm:$0xf]
        %v789 = vld [vmem:[%s217 + $0x5ac] sm:$0xf]
        %v790 = vld [vmem:[%s217 + $0x5b0] sm:$0xf]
        %v791 = vld [vmem:[%s217 + $0x5b4] sm:$0xf]
        %v792 = vld [vmem:[%s217 + $0x5b8] sm:$0xf]
        %v793 = vld [vmem:[%s217 + $0x5bc] sm:$0xf]
        %v794 = vld [vmem:[%s217 + $0x5c0] sm:$0xf]
        %v795 = vld [vmem:[%s217 + $0x5c4] sm:$0xf]
        %v796 = vld [vmem:[%s217 + $0x5c8] sm:$0xf]
        %v797 = vld [vmem:[%s217 + $0x5cc] sm:$0xf]
        %v798 = vld [vmem:[%s217 + $0x5d0] sm:$0xf]
        %v799 = vld [vmem:[%s217 + $0x5d4] sm:$0xf]
        %v800 = vld [vmem:[%s217 + $0x5d8] sm:$0xf]
        %v801 = vld [vmem:[%s217 + $0x5dc] sm:$0xf]
        %v802 = vld [vmem:[%s217 + $0x5e0] sm:$0xf]
        %v803 = vld [vmem:[%s217 + $0x5e4] sm:$0xf]
        %v804 = vld [vmem:[%s217 + $0x5e8] sm:$0xf]
        %v805 = vld [vmem:[%s217 + $0x5ec] sm:$0xf]
        %v806 = vld [vmem:[%s217 + $0x5f0] sm:$0xf]
        %v807 = vld [vmem:[%s217 + $0x5f4] sm:$0xf]
        %v808 = vld [vmem:[%s217 + $0x5f8] sm:$0xf]
        %v809 = vld [vmem:[%s217 + $0x5fc] sm:$0xf]
        %v810 = vld [vmem:[%s217 + $0x600] sm:$0xf]
        %v811 = vld [vmem:[%s217 + $0x604] sm:$0xf]
        %v812 = vld [vmem:[%s217 + $0x608] sm:$0xf]
        %v813 = vld [vmem:[%s217 + $0x60c] sm:$0xf]
        %v814 = vld [vmem:[%s217 + $0x610] sm:$0xf]
        %v815 = vld [vmem:[%s217 + $0x614] sm:$0xf]
        %v816 = vld [vmem:[%s217 + $0x618] sm:$0xf]
        %v817 = vld [vmem:[%s217 + $0x61c] sm:$0xf]
        %v818 = vld [vmem:[%s217 + $0x620] sm:$0xf]
        %v819 = vld [vmem:[%s217 + $0x624] sm:$0xf]
        %v820 = vld [vmem:[%s217 + $0x628] sm:$0xf]
        %v821 = vld [vmem:[%s217 + $0x62c] sm:$0xf]
        %v822 = vld [vmem:[%s217 + $0x630] sm:$0xf]
        %v823 = vld [vmem:[%s217 + $0x634] sm:$0xf]
        %v824 = vld [vmem:[%s217 + $0x638] sm:$0xf]
        %v825 = vld [vmem:[%s217 + $0x63c] sm:$0xf]
        %v826 = vld [vmem:[%s217 + $0x640] sm:$0xf]
        %v827 = vld [vmem:[%s217 + $0x644] sm:$0xf]
        %v828 = vld [vmem:[%s217 + $0x648] sm:$0xf]
        %v829 = vld [vmem:[%s217 + $0x64c] sm:$0xf]
        %v830 = vld [vmem:[%s217 + $0x650] sm:$0xf]
        %v831 = vld [vmem:[%s217 + $0x654] sm:$0xf]
        %v832 = vld [vmem:[%s217 + $0x658] sm:$0xf]
        %v833 = vld [vmem:[%s217 + $0x65c] sm:$0xf]
        %v834 = vld [vmem:[%s217 + $0x660] sm:$0xf]
        %v835 = vld [vmem:[%s217 + $0x664] sm:$0xf]
        %v836 = vld [vmem:[%s217 + $0x668] sm:$0xf]
        %v837 = vld [vmem:[%s217 + $0x66c] sm:$0xf]
        %v838 = vld [vmem:[%s217 + $0x670] sm:$0xf]
        %v839 = vld [vmem:[%s217 + $0x674] sm:$0xf]
        %v840 = vld [vmem:[%s217 + $0x678] sm:$0xf]
        %v841 = vld [vmem:[%s217 + $0x67c] sm:$0xf]
        %v842 = vld [vmem:[%s217 + $0x680] sm:$0xf]
        %v843 = vld [vmem:[%s217 + $0x684] sm:$0xf]
        %v844 = vld [vmem:[%s217 + $0x688] sm:$0xf]
        %v845 = vld [vmem:[%s217 + $0x68c] sm:$0xf]
        %v846 = vld [vmem:[%s217 + $0x690] sm:$0xf]
        %v847 = vld [vmem:[%s217 + $0x694] sm:$0xf]
        %v848 = vld [vmem:[%s217 + $0x698] sm:$0xf]
        %v849 = vld [vmem:[%s217 + $0x69c] sm:$0xf]
        %v850 = vld [vmem:[%s217 + $0x6a0] sm:$0xf]
        %v851 = vld [vmem:[%s217 + $0x6a4] sm:$0xf]
        %v852 = vld [vmem:[%s217 + $0x6a8] sm:$0xf]
        %v853 = vld [vmem:[%s217 + $0x6ac] sm:$0xf]
        %v854 = vld [vmem:[%s217 + $0x6b0] sm:$0xf]
        %v855 = vld [vmem:[%s217 + $0x6b4] sm:$0xf]
        %v856 = vld [vmem:[%s217 + $0x6b8] sm:$0xf]
        %v857 = vld [vmem:[%s217 + $0x6bc] sm:$0xf]
        %v858 = vld [vmem:[%s217 + $0x6c0] sm:$0xf]
        %v859 = vld [vmem:[%s217 + $0x6c4] sm:$0xf]
        %v860 = vld [vmem:[%s217 + $0x6c8] sm:$0xf]
        %v861 = vld [vmem:[%s217 + $0x6cc] sm:$0xf]
        %v862 = vld [vmem:[%s217 + $0x6d0] sm:$0xf]
        %v863 = vld [vmem:[%s217 + $0x6d4] sm:$0xf]
        %v864 = vld [vmem:[%s217 + $0x6d8] sm:$0xf]
        %v865 = vld [vmem:[%s217 + $0x6dc] sm:$0xf]
        %v866 = vld [vmem:[%s217 + $0x6e0] sm:$0xf]
        %v867 = vld [vmem:[%s217 + $0x6e4] sm:$0xf]
        %v868 = vld [vmem:[%s217 + $0x6e8] sm:$0xf]
        %v869 = vld [vmem:[%s217 + $0x6ec] sm:$0xf]
        %v870 = vld [vmem:[%s217 + $0x6f0] sm:$0xf]
        %v871 = vld [vmem:[%s217 + $0x6f4] sm:$0xf]
        %v872 = vld [vmem:[%s217 + $0x6f8] sm:$0xf]
        %v873 = vld [vmem:[%s217 + $0x6fc] sm:$0xf]
        %v874 = vld [vmem:[%s217 + $0x700] sm:$0xf]
        %v875 = vld [vmem:[%s217 + $0x704] sm:$0xf]
        %v876 = vld [vmem:[%s217 + $0x708] sm:$0xf]
        %v877 = vld [vmem:[%s217 + $0x70c] sm:$0xf]
        %v878 = vld [vmem:[%s217 + $0x710] sm:$0xf]
        %v879 = vld [vmem:[%s217 + $0x714] sm:$0xf]
        %v880 = vld [vmem:[%s217 + $0x718] sm:$0xf]
        %v881 = vld [vmem:[%s217 + $0x71c] sm:$0xf]
        %v882 = vld [vmem:[%s217 + $0x720] sm:$0xf]
        %v883 = vld [vmem:[%s217 + $0x724] sm:$0xf]
        %v884 = vld [vmem:[%s217 + $0x728] sm:$0xf]
        %v885 = vld [vmem:[%s217 + $0x72c] sm:$0xf]
        %v886 = vld [vmem:[%s217 + $0x730] sm:$0xf]
        %v887 = vld [vmem:[%s217 + $0x734] sm:$0xf]
        %v888 = vld [vmem:[%s217 + $0x738] sm:$0xf]
        %v889 = vld [vmem:[%s217 + $0x73c] sm:$0xf]
        %v890 = vld [vmem:[%s217 + $0x740] sm:$0xf]
        %v891 = vld [vmem:[%s217 + $0x744] sm:$0xf]
        %v892 = vld [vmem:[%s217 + $0x748] sm:$0xf]
        %v893 = vld [vmem:[%s217 + $0x74c] sm:$0xf]
        %v894 = vld [vmem:[%s217 + $0x750] sm:$0xf]
        %v895 = vld [vmem:[%s217 + $0x754] sm:$0xf]
        %v896 = vld [vmem:[%s217 + $0x758] sm:$0xf]
        %v897 = vld [vmem:[%s217 + $0x75c] sm:$0xf]
        %v898 = vld [vmem:[%s217 + $0x760] sm:$0xf]
        %v899 = vld [vmem:[%s217 + $0x764] sm:$0xf]
        %v900 = vld [vmem:[%s217 + $0x768] sm:$0xf]
        %v901 = vld [vmem:[%s217 + $0x76c] sm:$0xf]
        %v902 = vld [vmem:[%s217 + $0x770] sm:$0xf]
        %v903 = vld [vmem:[%s217 + $0x774] sm:$0xf]
        %v904 = vld [vmem:[%s217 + $0x778] sm:$0xf]
        %v905 = vld [vmem:[%s217 + $0x77c] sm:$0xf]
        %v906 = vld [vmem:[%s217 + $0x780] sm:$0xf]
        %v907 = vld [vmem:[%s217 + $0x784] sm:$0xf]
        %v908 = vld [vmem:[%s217 + $0x788] sm:$0xf]
        %v909 = vld [vmem:[%s217 + $0x78c] sm:$0xf]
        %v910 = vld [vmem:[%s217 + $0x790] sm:$0xf]
        %v911 = vld [vmem:[%s217 + $0x794] sm:$0xf]
        %v912 = vld [vmem:[%s217 + $0x798] sm:$0xf]
        %v913 = vld [vmem:[%s217 + $0x79c] sm:$0xf]
        %v914 = vld [vmem:[%s217 + $0x7a0] sm:$0xf]
        %v915 = vld [vmem:[%s217 + $0x7a4] sm:$0xf]
        %v916 = vld [vmem:[%s217 + $0x7a8] sm:$0xf]
        %v917 = vld [vmem:[%s217 + $0x7ac] sm:$0xf]
        %v918 = vld [vmem:[%s217 + $0x7b0] sm:$0xf]
        %v919 = vld [vmem:[%s217 + $0x7b4] sm:$0xf]
        %v920 = vld [vmem:[%s217 + $0x7b8] sm:$0xf]
        %v921 = vld [vmem:[%s217 + $0x7bc] sm:$0xf]
        %v922 = vld [vmem:[%s217 + $0x7c0] sm:$0xf]
        %v923 = vld [vmem:[%s217 + $0x7c4] sm:$0xf]
        %v924 = vld [vmem:[%s217 + $0x7c8] sm:$0xf]
        %v925 = vld [vmem:[%s217 + $0x7cc] sm:$0xf]
        %v926 = vld [vmem:[%s217 + $0x7d0] sm:$0xf]
        %v927 = vld [vmem:[%s217 + $0x7d4] sm:$0xf]
        %v928 = vld [vmem:[%s217 + $0x7d8] sm:$0xf]
        %v929 = vld [vmem:[%s217 + $0x7dc] sm:$0xf]
        %v930 = vld [vmem:[%s217 + $0x7e0] sm:$0xf]
        %v931 = vld [vmem:[%s217 + $0x7e4] sm:$0xf]
        %v932 = vld [vmem:[%s217 + $0x7e8] sm:$0xf]
        %v933 = vld [vmem:[%s217 + $0x7ec] sm:$0xf]
        %v934 = vld [vmem:[%s217 + $0x7f0] sm:$0xf]
        %v935 = vld [vmem:[%s217 + $0x7f4] sm:$0xf]
        %v936 = vld [vmem:[%s217 + $0x7f8] sm:$0xf]
        %v937 = vld [vmem:[%s217 + $0x7fc] sm:$0xf]
        %v1450 = vunpack.c.l.b16 %v426
        %v1451 = vunpack.c.l.b16 %v427
        %v1452 = vunpack.c.l.b16 %v428
        %v1453 = vunpack.c.l.b16 %v429
        %v1454 = vunpack.c.l.b16 %v430
        %v1455 = vunpack.c.l.b16 %v431
        %v1456 = vunpack.c.l.b16 %v432
        %v1457 = vunpack.c.l.b16 %v433
        %v1458 = vunpack.c.l.b16 %v434
        %v1459 = vunpack.c.l.b16 %v435
        %v1460 = vunpack.c.l.b16 %v436
        %v1461 = vunpack.c.l.b16 %v437
        %v1462 = vunpack.c.l.b16 %v438
        %v1463 = vunpack.c.l.b16 %v439
        %v1464 = vunpack.c.l.b16 %v440
        %v1465 = vunpack.c.l.b16 %v441
        %v1466 = vunpack.c.l.b16 %v442
        %v1467 = vunpack.c.l.b16 %v443
        %v1468 = vunpack.c.l.b16 %v444
        %v1469 = vunpack.c.l.b16 %v445
        %v1470 = vunpack.c.l.b16 %v446
        %v1471 = vunpack.c.l.b16 %v447
        %v1472 = vunpack.c.l.b16 %v448
        %v1473 = vunpack.c.l.b16 %v449
        %v1474 = vunpack.c.l.b16 %v450
        %v1475 = vunpack.c.l.b16 %v451
        %v1476 = vunpack.c.l.b16 %v452
        %v1477 = vunpack.c.l.b16 %v453
        %v1478 = vunpack.c.l.b16 %v454
        %v1479 = vunpack.c.l.b16 %v455
        %v1480 = vunpack.c.l.b16 %v456
        %v1481 = vunpack.c.l.b16 %v457
        %v1482 = vunpack.c.l.b16 %v458
        %v1483 = vunpack.c.l.b16 %v459
        %v1484 = vunpack.c.l.b16 %v460
        %v1485 = vunpack.c.l.b16 %v461
        %v1486 = vunpack.c.l.b16 %v462
        %v1487 = vunpack.c.l.b16 %v463
        %v1488 = vunpack.c.l.b16 %v464
        %v1489 = vunpack.c.l.b16 %v465
        %v1490 = vunpack.c.l.b16 %v466
        %v1491 = vunpack.c.l.b16 %v467
        %v1492 = vunpack.c.l.b16 %v468
        %v1493 = vunpack.c.l.b16 %v469
        %v1494 = vunpack.c.l.b16 %v470
        %v1495 = vunpack.c.l.b16 %v471
        %v1496 = vunpack.c.l.b16 %v472
        %v1497 = vunpack.c.l.b16 %v473
        %v1498 = vunpack.c.l.b16 %v474
        %v1499 = vunpack.c.l.b16 %v475
        %v1500 = vunpack.c.l.b16 %v476
        %v1501 = vunpack.c.l.b16 %v477
        %v1502 = vunpack.c.l.b16 %v478
        %v1503 = vunpack.c.l.b16 %v479
        %v1504 = vunpack.c.l.b16 %v480
        %v1505 = vunpack.c.l.b16 %v481
        %v1506 = vunpack.c.l.b16 %v482
        %v1507 = vunpack.c.l.b16 %v483
        %v1508 = vunpack.c.l.b16 %v484
        %v1509 = vunpack.c.l.b16 %v485
        %v1510 = vunpack.c.l.b16 %v486
        %v1511 = vunpack.c.l.b16 %v487
        %v1512 = vunpack.c.l.b16 %v488
        %v1513 = vunpack.c.l.b16 %v489
        %v1514 = vunpack.c.l.b16 %v490
        %v1515 = vunpack.c.l.b16 %v491
        %v1516 = vunpack.c.l.b16 %v492
        %v1517 = vunpack.c.l.b16 %v493
        %v1518 = vunpack.c.l.b16 %v494
        %v1519 = vunpack.c.l.b16 %v495
        %v1520 = vunpack.c.l.b16 %v496
        %v1521 = vunpack.c.l.b16 %v497
        %v1522 = vunpack.c.l.b16 %v498
        %v1523 = vunpack.c.l.b16 %v499
        %v1524 = vunpack.c.l.b16 %v500
        %v1525 = vunpack.c.l.b16 %v501
        %v1526 = vunpack.c.l.b16 %v502
        %v1527 = vunpack.c.l.b16 %v503
        %v1528 = vunpack.c.l.b16 %v504
        %v1529 = vunpack.c.l.b16 %v505
        %v1530 = vunpack.c.l.b16 %v506
        %v1531 = vunpack.c.l.b16 %v507
        %v1532 = vunpack.c.l.b16 %v508
        %v1533 = vunpack.c.l.b16 %v509
        %v1534 = vunpack.c.l.b16 %v510
        %v1535 = vunpack.c.l.b16 %v511
        %v1536 = vunpack.c.l.b16 %v512
        %v1537 = vunpack.c.l.b16 %v513
        %v1538 = vunpack.c.l.b16 %v514
        %v1539 = vunpack.c.l.b16 %v515
        %v1540 = vunpack.c.l.b16 %v516
        %v1541 = vunpack.c.l.b16 %v517
        %v1542 = vunpack.c.l.b16 %v518
        %v1543 = vunpack.c.l.b16 %v519
        %v1544 = vunpack.c.l.b16 %v520
        %v1545 = vunpack.c.l.b16 %v521
        %v1546 = vunpack.c.l.b16 %v522
        %v1547 = vunpack.c.l.b16 %v523
        %v1548 = vunpack.c.l.b16 %v524
        %v1549 = vunpack.c.l.b16 %v525
        %v1550 = vunpack.c.l.b16 %v526
        %v1551 = vunpack.c.l.b16 %v527
        %v1552 = vunpack.c.l.b16 %v528
        %v1553 = vunpack.c.l.b16 %v529
        %v1554 = vunpack.c.l.b16 %v530
        %v1555 = vunpack.c.l.b16 %v531
        %v1556 = vunpack.c.l.b16 %v532
        %v1557 = vunpack.c.l.b16 %v533
        %v1558 = vunpack.c.l.b16 %v534
        %v1559 = vunpack.c.l.b16 %v535
        %v1560 = vunpack.c.l.b16 %v536
        %v1561 = vunpack.c.l.b16 %v537
        %v1562 = vunpack.c.l.b16 %v538
        %v1563 = vunpack.c.l.b16 %v539
        %v1564 = vunpack.c.l.b16 %v540
        %v1565 = vunpack.c.l.b16 %v541
        %v1566 = vunpack.c.l.b16 %v542
        %v1567 = vunpack.c.l.b16 %v543
        %v1568 = vunpack.c.l.b16 %v544
        %v1569 = vunpack.c.l.b16 %v545
        %v1570 = vunpack.c.l.b16 %v546
        %v1571 = vunpack.c.l.b16 %v547
        %v1572 = vunpack.c.l.b16 %v548
        %v1573 = vunpack.c.l.b16 %v549
        %v1574 = vunpack.c.l.b16 %v550
        %v1575 = vunpack.c.l.b16 %v551
        %v1576 = vunpack.c.l.b16 %v552
        %v1577 = vunpack.c.l.b16 %v553
        %v1578 = vunpack.c.l.b16 %v554
        %v1579 = vunpack.c.l.b16 %v555
        %v1580 = vunpack.c.l.b16 %v556
        %v1581 = vunpack.c.l.b16 %v557
        %v1582 = vunpack.c.l.b16 %v558
        %v1583 = vunpack.c.l.b16 %v559
        %v1584 = vunpack.c.l.b16 %v560
        %v1585 = vunpack.c.l.b16 %v561
        %v1586 = vunpack.c.l.b16 %v562
        %v1587 = vunpack.c.l.b16 %v563
        %v1588 = vunpack.c.l.b16 %v564
        %v1589 = vunpack.c.l.b16 %v565
        %v1590 = vunpack.c.l.b16 %v566
        %v1591 = vunpack.c.l.b16 %v567
        %v1592 = vunpack.c.l.b16 %v568
        %v1593 = vunpack.c.l.b16 %v569
        %v1594 = vunpack.c.l.b16 %v570
        %v1595 = vunpack.c.l.b16 %v571
        %v1596 = vunpack.c.l.b16 %v572
        %v1597 = vunpack.c.l.b16 %v573
        %v1598 = vunpack.c.l.b16 %v574
        %v1599 = vunpack.c.l.b16 %v575
        %v1600 = vunpack.c.l.b16 %v576
        %v1601 = vunpack.c.l.b16 %v577
        %v1602 = vunpack.c.l.b16 %v578
        %v1603 = vunpack.c.l.b16 %v579
        %v1604 = vunpack.c.l.b16 %v580
        %v1605 = vunpack.c.l.b16 %v581
        %v1606 = vunpack.c.l.b16 %v582
        %v1607 = vunpack.c.l.b16 %v583
        %v1608 = vunpack.c.l.b16 %v584
        %v1609 = vunpack.c.l.b16 %v585
        %v1610 = vunpack.c.l.b16 %v586
        %v1611 = vunpack.c.l.b16 %v587
        %v1612 = vunpack.c.l.b16 %v588
        %v1613 = vunpack.c.l.b16 %v589
        %v1614 = vunpack.c.l.b16 %v590
        %v1615 = vunpack.c.l.b16 %v591
        %v1616 = vunpack.c.l.b16 %v592
        %v1617 = vunpack.c.l.b16 %v593
        %v1618 = vunpack.c.l.b16 %v594
        %v1619 = vunpack.c.l.b16 %v595
        %v1620 = vunpack.c.l.b16 %v596
        %v1621 = vunpack.c.l.b16 %v597
        %v1622 = vunpack.c.l.b16 %v598
        %v1623 = vunpack.c.l.b16 %v599
        %v1624 = vunpack.c.l.b16 %v600
        %v1625 = vunpack.c.l.b16 %v601
        %v1626 = vunpack.c.l.b16 %v602
        %v1627 = vunpack.c.l.b16 %v603
        %v1628 = vunpack.c.l.b16 %v604
        %v1629 = vunpack.c.l.b16 %v605
        %v1630 = vunpack.c.l.b16 %v606
        %v1631 = vunpack.c.l.b16 %v607
        %v1632 = vunpack.c.l.b16 %v608
        %v1633 = vunpack.c.l.b16 %v609
        %v1634 = vunpack.c.l.b16 %v610
        %v1635 = vunpack.c.l.b16 %v611
        %v1636 = vunpack.c.l.b16 %v612
        %v1637 = vunpack.c.l.b16 %v613
        %v1638 = vunpack.c.l.b16 %v614
        %v1639 = vunpack.c.l.b16 %v615
        %v1640 = vunpack.c.l.b16 %v616
        %v1641 = vunpack.c.l.b16 %v617
        %v1642 = vunpack.c.l.b16 %v618
        %v1643 = vunpack.c.l.b16 %v619
        %v1644 = vunpack.c.l.b16 %v620
        %v1645 = vunpack.c.l.b16 %v621
        %v1646 = vunpack.c.l.b16 %v622
        %v1647 = vunpack.c.l.b16 %v623
        %v1648 = vunpack.c.l.b16 %v624
        %v1649 = vunpack.c.l.b16 %v625
        %v1650 = vunpack.c.l.b16 %v626
        %v1651 = vunpack.c.l.b16 %v627
        %v1652 = vunpack.c.l.b16 %v628
        %v1653 = vunpack.c.l.b16 %v629
        %v1654 = vunpack.c.l.b16 %v630
        %v1655 = vunpack.c.l.b16 %v631
        %v1656 = vunpack.c.l.b16 %v632
        %v1657 = vunpack.c.l.b16 %v633
        %v1658 = vunpack.c.l.b16 %v634
        %v1659 = vunpack.c.l.b16 %v635
        %v1660 = vunpack.c.l.b16 %v636
        %v1661 = vunpack.c.l.b16 %v637
        %v1662 = vunpack.c.l.b16 %v638
        %v1663 = vunpack.c.l.b16 %v639
        %v1664 = vunpack.c.l.b16 %v640
        %v1665 = vunpack.c.l.b16 %v641
        %v1666 = vunpack.c.l.b16 %v642
        %v1667 = vunpack.c.l.b16 %v643
        %v1668 = vunpack.c.l.b16 %v644
        %v1669 = vunpack.c.l.b16 %v645
        %v1670 = vunpack.c.l.b16 %v646
        %v1671 = vunpack.c.l.b16 %v647
        %v1672 = vunpack.c.l.b16 %v648
        %v1673 = vunpack.c.l.b16 %v649
        %v1674 = vunpack.c.l.b16 %v650
        %v1675 = vunpack.c.l.b16 %v651
        %v1676 = vunpack.c.l.b16 %v652
        %v1677 = vunpack.c.l.b16 %v653
        %v1678 = vunpack.c.l.b16 %v654
        %v1679 = vunpack.c.l.b16 %v655
        %v1680 = vunpack.c.l.b16 %v656
        %v1681 = vunpack.c.l.b16 %v657
        %v1682 = vunpack.c.l.b16 %v658
        %v1683 = vunpack.c.l.b16 %v659
        %v1684 = vunpack.c.l.b16 %v660
        %v1685 = vunpack.c.l.b16 %v661
        %v1686 = vunpack.c.l.b16 %v662
        %v1687 = vunpack.c.l.b16 %v663
        %v1688 = vunpack.c.l.b16 %v664
        %v1689 = vunpack.c.l.b16 %v665
        %v1690 = vunpack.c.l.b16 %v666
        %v1691 = vunpack.c.l.b16 %v667
        %v1692 = vunpack.c.l.b16 %v668
        %v1693 = vunpack.c.l.b16 %v669
        %v1694 = vunpack.c.l.b16 %v670
        %v1695 = vunpack.c.l.b16 %v671
        %v1696 = vunpack.c.l.b16 %v672
        %v1697 = vunpack.c.l.b16 %v673
        %v1698 = vunpack.c.l.b16 %v674
        %v1699 = vunpack.c.l.b16 %v675
        %v1700 = vunpack.c.l.b16 %v676
        %v1701 = vunpack.c.l.b16 %v677
        %v1702 = vunpack.c.l.b16 %v678
        %v1703 = vunpack.c.l.b16 %v679
        %v1704 = vunpack.c.l.b16 %v680
        %v1705 = vunpack.c.l.b16 %v681
        %v1706 = vunpack.c.l.b16 %v682
        %v1707 = vunpack.c.l.b16 %v683
        %v1708 = vunpack.c.l.b16 %v684
        %v1709 = vunpack.c.l.b16 %v685
        %v1710 = vunpack.c.l.b16 %v686
        %v1711 = vunpack.c.l.b16 %v687
        %v1712 = vunpack.c.l.b16 %v688
        %v1713 = vunpack.c.l.b16 %v689
        %v1714 = vunpack.c.l.b16 %v690
        %v1715 = vunpack.c.l.b16 %v691
        %v1716 = vunpack.c.l.b16 %v692
        %v1717 = vunpack.c.l.b16 %v693
        %v1718 = vunpack.c.l.b16 %v694
        %v1719 = vunpack.c.l.b16 %v695
        %v1720 = vunpack.c.l.b16 %v696
        %v1721 = vunpack.c.l.b16 %v697
        %v1722 = vunpack.c.l.b16 %v698
        %v1723 = vunpack.c.l.b16 %v699
        %v1724 = vunpack.c.l.b16 %v700
        %v1725 = vunpack.c.l.b16 %v701
        %v1726 = vunpack.c.l.b16 %v702
        %v1727 = vunpack.c.l.b16 %v703
        %v1728 = vunpack.c.l.b16 %v704
        %v1729 = vunpack.c.l.b16 %v705
        %v1730 = vunpack.c.l.b16 %v706
        %v1731 = vunpack.c.l.b16 %v707
        %v1732 = vunpack.c.l.b16 %v708
        %v1733 = vunpack.c.l.b16 %v709
        %v1734 = vunpack.c.l.b16 %v710
        %v1735 = vunpack.c.l.b16 %v711
        %v1736 = vunpack.c.l.b16 %v712
        %v1737 = vunpack.c.l.b16 %v713
        %v1738 = vunpack.c.l.b16 %v714
        %v1739 = vunpack.c.l.b16 %v715
        %v1740 = vunpack.c.l.b16 %v716
        %v1741 = vunpack.c.l.b16 %v717
        %v1742 = vunpack.c.l.b16 %v718
        %v1743 = vunpack.c.l.b16 %v719
        %v1744 = vunpack.c.l.b16 %v720
        %v1745 = vunpack.c.l.b16 %v721
        %v1746 = vunpack.c.l.b16 %v722
        %v1747 = vunpack.c.l.b16 %v723
        %v1748 = vunpack.c.l.b16 %v724
        %v1749 = vunpack.c.l.b16 %v725
        %v1750 = vunpack.c.l.b16 %v726
        %v1751 = vunpack.c.l.b16 %v727
        %v1752 = vunpack.c.l.b16 %v728
        %v1753 = vunpack.c.l.b16 %v729
        %v1754 = vunpack.c.l.b16 %v730
        %v1755 = vunpack.c.l.b16 %v731
        %v1756 = vunpack.c.l.b16 %v732
        %v1757 = vunpack.c.l.b16 %v733
        %v1758 = vunpack.c.l.b16 %v734
        %v1759 = vunpack.c.l.b16 %v735
        %v1760 = vunpack.c.l.b16 %v736
        %v1761 = vunpack.c.l.b16 %v737
        %v1762 = vunpack.c.l.b16 %v738
        %v1763 = vunpack.c.l.b16 %v739
        %v1764 = vunpack.c.l.b16 %v740
        %v1765 = vunpack.c.l.b16 %v741
        %v1766 = vunpack.c.l.b16 %v742
        %v1767 = vunpack.c.l.b16 %v743
        %v1768 = vunpack.c.l.b16 %v744
        %v1769 = vunpack.c.l.b16 %v745
        %v1770 = vunpack.c.l.b16 %v746
        %v1771 = vunpack.c.l.b16 %v747
        %v1772 = vunpack.c.l.b16 %v748
        %v1773 = vunpack.c.l.b16 %v749
        %v1774 = vunpack.c.l.b16 %v750
        %v1775 = vunpack.c.l.b16 %v751
        %v1776 = vunpack.c.l.b16 %v752
        %v1777 = vunpack.c.l.b16 %v753
        %v1778 = vunpack.c.l.b16 %v754
        %v1779 = vunpack.c.l.b16 %v755
        %v1780 = vunpack.c.l.b16 %v756
        %v1781 = vunpack.c.l.b16 %v757
        %v1782 = vunpack.c.l.b16 %v758
        %v1783 = vunpack.c.l.b16 %v759
        %v1784 = vunpack.c.l.b16 %v760
        %v1785 = vunpack.c.l.b16 %v761
        %v1786 = vunpack.c.l.b16 %v762
        %v1787 = vunpack.c.l.b16 %v763
        %v1788 = vunpack.c.l.b16 %v764
        %v1789 = vunpack.c.l.b16 %v765
        %v1790 = vunpack.c.l.b16 %v766
        %v1791 = vunpack.c.l.b16 %v767
        %v1792 = vunpack.c.l.b16 %v768
        %v1793 = vunpack.c.l.b16 %v769
        %v1794 = vunpack.c.l.b16 %v770
        %v1795 = vunpack.c.l.b16 %v771
        %v1796 = vunpack.c.l.b16 %v772
        %v1797 = vunpack.c.l.b16 %v773
        %v1798 = vunpack.c.l.b16 %v774
        %v1799 = vunpack.c.l.b16 %v775
        %v1800 = vunpack.c.l.b16 %v776
        %v1801 = vunpack.c.l.b16 %v777
        %v1802 = vunpack.c.l.b16 %v778
        %v1803 = vunpack.c.l.b16 %v779
        %v1804 = vunpack.c.l.b16 %v780
        %v1805 = vunpack.c.l.b16 %v781
        %v1806 = vunpack.c.l.b16 %v782
        %v1807 = vunpack.c.l.b16 %v783
        %v1808 = vunpack.c.l.b16 %v784
        %v1809 = vunpack.c.l.b16 %v785
        %v1810 = vunpack.c.l.b16 %v786
        %v1811 = vunpack.c.l.b16 %v787
        %v1812 = vunpack.c.l.b16 %v788
        %v1813 = vunpack.c.l.b16 %v789
        %v1814 = vunpack.c.l.b16 %v790
        %v1815 = vunpack.c.l.b16 %v791
        %v1816 = vunpack.c.l.b16 %v792
        %v1817 = vunpack.c.l.b16 %v793
        %v1818 = vunpack.c.l.b16 %v794
        %v1819 = vunpack.c.l.b16 %v795
        %v1820 = vunpack.c.l.b16 %v796
        %v1821 = vunpack.c.l.b16 %v797
        %v1822 = vunpack.c.l.b16 %v798
        %v1823 = vunpack.c.l.b16 %v799
        %v1824 = vunpack.c.l.b16 %v800
        %v1825 = vunpack.c.l.b16 %v801
        %v1826 = vunpack.c.l.b16 %v802
        %v1827 = vunpack.c.l.b16 %v803
        %v1828 = vunpack.c.l.b16 %v804
        %v1829 = vunpack.c.l.b16 %v805
        %v1830 = vunpack.c.l.b16 %v806
        %v1831 = vunpack.c.l.b16 %v807
        %v1832 = vunpack.c.l.b16 %v808
        %v1833 = vunpack.c.l.b16 %v809
        %v1834 = vunpack.c.l.b16 %v810
        %v1835 = vunpack.c.l.b16 %v811
        %v1836 = vunpack.c.l.b16 %v812
        %v1837 = vunpack.c.l.b16 %v813
        %v1838 = vunpack.c.l.b16 %v814
        %v1839 = vunpack.c.l.b16 %v815
        %v1840 = vunpack.c.l.b16 %v816
        %v1841 = vunpack.c.l.b16 %v817
        %v1842 = vunpack.c.l.b16 %v818
        %v1843 = vunpack.c.l.b16 %v819
        %v1844 = vunpack.c.l.b16 %v820
        %v1845 = vunpack.c.l.b16 %v821
        %v1846 = vunpack.c.l.b16 %v822
        %v1847 = vunpack.c.l.b16 %v823
        %v1848 = vunpack.c.l.b16 %v824
        %v1849 = vunpack.c.l.b16 %v825
        %v1850 = vunpack.c.l.b16 %v826
        %v1851 = vunpack.c.l.b16 %v827
        %v1852 = vunpack.c.l.b16 %v828
        %v1853 = vunpack.c.l.b16 %v829
        %v1854 = vunpack.c.l.b16 %v830
        %v1855 = vunpack.c.l.b16 %v831
        %v1856 = vunpack.c.l.b16 %v832
        %v1857 = vunpack.c.l.b16 %v833
        %v1858 = vunpack.c.l.b16 %v834
        %v1859 = vunpack.c.l.b16 %v835
        %v1860 = vunpack.c.l.b16 %v836
        %v1861 = vunpack.c.l.b16 %v837
        %v1862 = vunpack.c.l.b16 %v838
        %v1863 = vunpack.c.l.b16 %v839
        %v1864 = vunpack.c.l.b16 %v840
        %v1865 = vunpack.c.l.b16 %v841
        %v1866 = vunpack.c.l.b16 %v842
        %v1867 = vunpack.c.l.b16 %v843
        %v1868 = vunpack.c.l.b16 %v844
        %v1869 = vunpack.c.l.b16 %v845
        %v1870 = vunpack.c.l.b16 %v846
        %v1871 = vunpack.c.l.b16 %v847
        %v1872 = vunpack.c.l.b16 %v848
        %v1873 = vunpack.c.l.b16 %v849
        %v1874 = vunpack.c.l.b16 %v850
        %v1875 = vunpack.c.l.b16 %v851
        %v1876 = vunpack.c.l.b16 %v852
        %v1877 = vunpack.c.l.b16 %v853
        %v1878 = vunpack.c.l.b16 %v854
        %v1879 = vunpack.c.l.b16 %v855
        %v1880 = vunpack.c.l.b16 %v856
        %v1881 = vunpack.c.l.b16 %v857
        %v1882 = vunpack.c.l.b16 %v858
        %v1883 = vunpack.c.l.b16 %v859
        %v1884 = vunpack.c.l.b16 %v860
        %v1885 = vunpack.c.l.b16 %v861
        %v1886 = vunpack.c.l.b16 %v862
        %v1887 = vunpack.c.l.b16 %v863
        %v1888 = vunpack.c.l.b16 %v864
        %v1889 = vunpack.c.l.b16 %v865
        %v1890 = vunpack.c.l.b16 %v866
        %v1891 = vunpack.c.l.b16 %v867
        %v1892 = vunpack.c.l.b16 %v868
        %v1893 = vunpack.c.l.b16 %v869
        %v1894 = vunpack.c.l.b16 %v870
        %v1895 = vunpack.c.l.b16 %v871
        %v1896 = vunpack.c.l.b16 %v872
        %v1897 = vunpack.c.l.b16 %v873
        %v1898 = vunpack.c.l.b16 %v874
        %v1899 = vunpack.c.l.b16 %v875
        %v1900 = vunpack.c.l.b16 %v876
        %v1901 = vunpack.c.l.b16 %v877
        %v1902 = vunpack.c.l.b16 %v878
        %v1903 = vunpack.c.l.b16 %v879
        %v1904 = vunpack.c.l.b16 %v880
        %v1905 = vunpack.c.l.b16 %v881
        %v1906 = vunpack.c.l.b16 %v882
        %v1907 = vunpack.c.l.b16 %v883
        %v1908 = vunpack.c.l.b16 %v884
        %v1909 = vunpack.c.l.b16 %v885
        %v1910 = vunpack.c.l.b16 %v886
        %v1911 = vunpack.c.l.b16 %v887
        %v1912 = vunpack.c.l.b16 %v888
        %v1913 = vunpack.c.l.b16 %v889
        %v1914 = vunpack.c.l.b16 %v890
        %v1915 = vunpack.c.l.b16 %v891
        %v1916 = vunpack.c.l.b16 %v892
        %v1917 = vunpack.c.l.b16 %v893
        %v1918 = vunpack.c.l.b16 %v894
        %v1919 = vunpack.c.l.b16 %v895
        %v1920 = vunpack.c.l.b16 %v896
        %v1921 = vunpack.c.l.b16 %v897
        %v1922 = vunpack.c.l.b16 %v898
        %v1923 = vunpack.c.l.b16 %v899
        %v1924 = vunpack.c.l.b16 %v900
        %v1925 = vunpack.c.l.b16 %v901
        %v1926 = vunpack.c.l.b16 %v902
        %v1927 = vunpack.c.l.b16 %v903
        %v1928 = vunpack.c.l.b16 %v904
        %v1929 = vunpack.c.l.b16 %v905
        %v1930 = vunpack.c.l.b16 %v906
        %v1931 = vunpack.c.l.b16 %v907
        %v1932 = vunpack.c.l.b16 %v908
        %v1933 = vunpack.c.l.b16 %v909
        %v1934 = vunpack.c.l.b16 %v910
        %v1935 = vunpack.c.l.b16 %v911
        %v1936 = vunpack.c.l.b16 %v912
        %v1937 = vunpack.c.l.b16 %v913
        %v1938 = vunpack.c.l.b16 %v914
        %v1939 = vunpack.c.l.b16 %v915
        %v1940 = vunpack.c.l.b16 %v916
        %v1941 = vunpack.c.l.b16 %v917
        %v1942 = vunpack.c.l.b16 %v918
        %v1943 = vunpack.c.l.b16 %v919
        %v1944 = vunpack.c.l.b16 %v920
        %v1945 = vunpack.c.l.b16 %v921
        %v1946 = vunpack.c.l.b16 %v922
        %v1947 = vunpack.c.l.b16 %v923
        %v1948 = vunpack.c.l.b16 %v924
        %v1949 = vunpack.c.l.b16 %v925
        %v1950 = vunpack.c.l.b16 %v926
        %v1951 = vunpack.c.l.b16 %v927
        %v1952 = vunpack.c.l.b16 %v928
        %v1953 = vunpack.c.l.b16 %v929
        %v1954 = vunpack.c.l.b16 %v930
        %v1955 = vunpack.c.l.b16 %v931
        %v1956 = vunpack.c.l.b16 %v932
        %v1957 = vunpack.c.l.b16 %v933
        %v1958 = vunpack.c.l.b16 %v934
        %v1959 = vunpack.c.l.b16 %v935
        %v1960 = vunpack.c.l.b16 %v936
        %v1961 = vunpack.c.l.b16 %v937
        %v1962 = vpack.c.b16 %v1451, %v1450
        %v1963 = vpack.c.b16 %v1453, %v1452
        %v1964 = vpack.c.b16 %v1455, %v1454
        %v1965 = vpack.c.b16 %v1457, %v1456
        %v1966 = vpack.c.b16 %v1459, %v1458
        %v1967 = vpack.c.b16 %v1461, %v1460
        %v1968 = vpack.c.b16 %v1463, %v1462
        %v1969 = vpack.c.b16 %v1465, %v1464
        %v1970 = vpack.c.b16 %v1467, %v1466
        %v1971 = vpack.c.b16 %v1469, %v1468
        %v1972 = vpack.c.b16 %v1471, %v1470
        %v1973 = vpack.c.b16 %v1473, %v1472
        %v1974 = vpack.c.b16 %v1475, %v1474
        %v1975 = vpack.c.b16 %v1477, %v1476
        %v1976 = vpack.c.b16 %v1479, %v1478
        %v1977 = vpack.c.b16 %v1481, %v1480
        %v1978 = vpack.c.b16 %v1483, %v1482
        %v1979 = vpack.c.b16 %v1485, %v1484
        %v1980 = vpack.c.b16 %v1487, %v1486
        %v1981 = vpack.c.b16 %v1489, %v1488
        %v1982 = vpack.c.b16 %v1491, %v1490
        %v1983 = vpack.c.b16 %v1493, %v1492
        %v1984 = vpack.c.b16 %v1495, %v1494
        %v1985 = vpack.c.b16 %v1497, %v1496
        %v1986 = vpack.c.b16 %v1499, %v1498
        %v1987 = vpack.c.b16 %v1501, %v1500
        %v1988 = vpack.c.b16 %v1503, %v1502
        %v1989 = vpack.c.b16 %v1505, %v1504
        %v1990 = vpack.c.b16 %v1507, %v1506
        %v1991 = vpack.c.b16 %v1509, %v1508
        %v1992 = vpack.c.b16 %v1511, %v1510
        %v1993 = vpack.c.b16 %v1513, %v1512
        %v1994 = vpack.c.b16 %v1515, %v1514
        %v1995 = vpack.c.b16 %v1517, %v1516
        %v1996 = vpack.c.b16 %v1519, %v1518
        %v1997 = vpack.c.b16 %v1521, %v1520
        %v1998 = vpack.c.b16 %v1523, %v1522
        %v1999 = vpack.c.b16 %v1525, %v1524
        %v2000 = vpack.c.b16 %v1527, %v1526
        %v2001 = vpack.c.b16 %v1529, %v1528
        %v2002 = vpack.c.b16 %v1531, %v1530
        %v2003 = vpack.c.b16 %v1533, %v1532
        %v2004 = vpack.c.b16 %v1535, %v1534
        %v2005 = vpack.c.b16 %v1537, %v1536
        %v2006 = vpack.c.b16 %v1539, %v1538
        %v2007 = vpack.c.b16 %v1541, %v1540
        %v2008 = vpack.c.b16 %v1543, %v1542
        %v2009 = vpack.c.b16 %v1545, %v1544
        %v2010 = vpack.c.b16 %v1547, %v1546
        %v2011 = vpack.c.b16 %v1549, %v1548
        %v2012 = vpack.c.b16 %v1551, %v1550
        %v2013 = vpack.c.b16 %v1553, %v1552
        %v2014 = vpack.c.b16 %v1555, %v1554
        %v2015 = vpack.c.b16 %v1557, %v1556
        %v2016 = vpack.c.b16 %v1559, %v1558
        %v2017 = vpack.c.b16 %v1561, %v1560
        %v2018 = vpack.c.b16 %v1563, %v1562
        %v2019 = vpack.c.b16 %v1565, %v1564
        %v2020 = vpack.c.b16 %v1567, %v1566
        %v2021 = vpack.c.b16 %v1569, %v1568
        %v2022 = vpack.c.b16 %v1571, %v1570
        %v2023 = vpack.c.b16 %v1573, %v1572
        %v2024 = vpack.c.b16 %v1575, %v1574
        %v2025 = vpack.c.b16 %v1577, %v1576
        %v2026 = vpack.c.b16 %v1579, %v1578
        %v2027 = vpack.c.b16 %v1581, %v1580
        %v2028 = vpack.c.b16 %v1583, %v1582
        %v2029 = vpack.c.b16 %v1585, %v1584
        %v2030 = vpack.c.b16 %v1587, %v1586
        %v2031 = vpack.c.b16 %v1589, %v1588
        %v2032 = vpack.c.b16 %v1591, %v1590
        %v2033 = vpack.c.b16 %v1593, %v1592
        %v2034 = vpack.c.b16 %v1595, %v1594
        %v2035 = vpack.c.b16 %v1597, %v1596
        %v2036 = vpack.c.b16 %v1599, %v1598
        %v2037 = vpack.c.b16 %v1601, %v1600
        %v2038 = vpack.c.b16 %v1603, %v1602
        %v2039 = vpack.c.b16 %v1605, %v1604
        %v2040 = vpack.c.b16 %v1607, %v1606
        %v2041 = vpack.c.b16 %v1609, %v1608
        %v2042 = vpack.c.b16 %v1611, %v1610
        %v2043 = vpack.c.b16 %v1613, %v1612
        %v2044 = vpack.c.b16 %v1615, %v1614
        %v2045 = vpack.c.b16 %v1617, %v1616
        %v2046 = vpack.c.b16 %v1619, %v1618
        %v2047 = vpack.c.b16 %v1621, %v1620
        %v2048 = vpack.c.b16 %v1623, %v1622
        %v2049 = vpack.c.b16 %v1625, %v1624
        %v2050 = vpack.c.b16 %v1627, %v1626
        %v2051 = vpack.c.b16 %v1629, %v1628
        %v2052 = vpack.c.b16 %v1631, %v1630
        %v2053 = vpack.c.b16 %v1633, %v1632
        %v2054 = vpack.c.b16 %v1635, %v1634
        %v2055 = vpack.c.b16 %v1637, %v1636
        %v2056 = vpack.c.b16 %v1639, %v1638
        %v2057 = vpack.c.b16 %v1641, %v1640
        %v2058 = vpack.c.b16 %v1643, %v1642
        %v2059 = vpack.c.b16 %v1645, %v1644
        %v2060 = vpack.c.b16 %v1647, %v1646
        %v2061 = vpack.c.b16 %v1649, %v1648
        %v2062 = vpack.c.b16 %v1651, %v1650
        %v2063 = vpack.c.b16 %v1653, %v1652
        %v2064 = vpack.c.b16 %v1655, %v1654
        %v2065 = vpack.c.b16 %v1657, %v1656
        %v2066 = vpack.c.b16 %v1659, %v1658
        %v2067 = vpack.c.b16 %v1661, %v1660
        %v2068 = vpack.c.b16 %v1663, %v1662
        %v2069 = vpack.c.b16 %v1665, %v1664
        %v2070 = vpack.c.b16 %v1667, %v1666
        %v2071 = vpack.c.b16 %v1669, %v1668
        %v2072 = vpack.c.b16 %v1671, %v1670
        %v2073 = vpack.c.b16 %v1673, %v1672
        %v2074 = vpack.c.b16 %v1675, %v1674
        %v2075 = vpack.c.b16 %v1677, %v1676
        %v2076 = vpack.c.b16 %v1679, %v1678
        %v2077 = vpack.c.b16 %v1681, %v1680
        %v2078 = vpack.c.b16 %v1683, %v1682
        %v2079 = vpack.c.b16 %v1685, %v1684
        %v2080 = vpack.c.b16 %v1687, %v1686
        %v2081 = vpack.c.b16 %v1689, %v1688
        %v2082 = vpack.c.b16 %v1691, %v1690
        %v2083 = vpack.c.b16 %v1693, %v1692
        %v2084 = vpack.c.b16 %v1695, %v1694
        %v2085 = vpack.c.b16 %v1697, %v1696
        %v2086 = vpack.c.b16 %v1699, %v1698
        %v2087 = vpack.c.b16 %v1701, %v1700
        %v2088 = vpack.c.b16 %v1703, %v1702
        %v2089 = vpack.c.b16 %v1705, %v1704
        %v2090 = vpack.c.b16 %v1707, %v1706
        %v2091 = vpack.c.b16 %v1709, %v1708
        %v2092 = vpack.c.b16 %v1711, %v1710
        %v2093 = vpack.c.b16 %v1713, %v1712
        %v2094 = vpack.c.b16 %v1715, %v1714
        %v2095 = vpack.c.b16 %v1717, %v1716
        %v2096 = vpack.c.b16 %v1719, %v1718
        %v2097 = vpack.c.b16 %v1721, %v1720
        %v2098 = vpack.c.b16 %v1723, %v1722
        %v2099 = vpack.c.b16 %v1725, %v1724
        %v2100 = vpack.c.b16 %v1727, %v1726
        %v2101 = vpack.c.b16 %v1729, %v1728
        %v2102 = vpack.c.b16 %v1731, %v1730
        %v2103 = vpack.c.b16 %v1733, %v1732
        %v2104 = vpack.c.b16 %v1735, %v1734
        %v2105 = vpack.c.b16 %v1737, %v1736
        %v2106 = vpack.c.b16 %v1739, %v1738
        %v2107 = vpack.c.b16 %v1741, %v1740
        %v2108 = vpack.c.b16 %v1743, %v1742
        %v2109 = vpack.c.b16 %v1745, %v1744
        %v2110 = vpack.c.b16 %v1747, %v1746
        %v2111 = vpack.c.b16 %v1749, %v1748
        %v2112 = vpack.c.b16 %v1751, %v1750
        %v2113 = vpack.c.b16 %v1753, %v1752
        %v2114 = vpack.c.b16 %v1755, %v1754
        %v2115 = vpack.c.b16 %v1757, %v1756
        %v2116 = vpack.c.b16 %v1759, %v1758
        %v2117 = vpack.c.b16 %v1761, %v1760
        %v2118 = vpack.c.b16 %v1763, %v1762
        %v2119 = vpack.c.b16 %v1765, %v1764
        %v2120 = vpack.c.b16 %v1767, %v1766
        %v2121 = vpack.c.b16 %v1769, %v1768
        %v2122 = vpack.c.b16 %v1771, %v1770
        %v2123 = vpack.c.b16 %v1773, %v1772
        %v2124 = vpack.c.b16 %v1775, %v1774
        %v2125 = vpack.c.b16 %v1777, %v1776
        %v2126 = vpack.c.b16 %v1779, %v1778
        %v2127 = vpack.c.b16 %v1781, %v1780
        %v2128 = vpack.c.b16 %v1783, %v1782
        %v2129 = vpack.c.b16 %v1785, %v1784
        %v2130 = vpack.c.b16 %v1787, %v1786
        %v2131 = vpack.c.b16 %v1789, %v1788
        %v2132 = vpack.c.b16 %v1791, %v1790
        %v2133 = vpack.c.b16 %v1793, %v1792
        %v2134 = vpack.c.b16 %v1795, %v1794
        %v2135 = vpack.c.b16 %v1797, %v1796
        %v2136 = vpack.c.b16 %v1799, %v1798
        %v2137 = vpack.c.b16 %v1801, %v1800
        %v2138 = vpack.c.b16 %v1803, %v1802
        %v2139 = vpack.c.b16 %v1805, %v1804
        %v2140 = vpack.c.b16 %v1807, %v1806
        %v2141 = vpack.c.b16 %v1809, %v1808
        %v2142 = vpack.c.b16 %v1811, %v1810
        %v2143 = vpack.c.b16 %v1813, %v1812
        %v2144 = vpack.c.b16 %v1815, %v1814
        %v2145 = vpack.c.b16 %v1817, %v1816
        %v2146 = vpack.c.b16 %v1819, %v1818
        %v2147 = vpack.c.b16 %v1821, %v1820
        %v2148 = vpack.c.b16 %v1823, %v1822
        %v2149 = vpack.c.b16 %v1825, %v1824
        %v2150 = vpack.c.b16 %v1827, %v1826
        %v2151 = vpack.c.b16 %v1829, %v1828
        %v2152 = vpack.c.b16 %v1831, %v1830
        %v2153 = vpack.c.b16 %v1833, %v1832
        %v2154 = vpack.c.b16 %v1835, %v1834
        %v2155 = vpack.c.b16 %v1837, %v1836
        %v2156 = vpack.c.b16 %v1839, %v1838
        %v2157 = vpack.c.b16 %v1841, %v1840
        %v2158 = vpack.c.b16 %v1843, %v1842
        %v2159 = vpack.c.b16 %v1845, %v1844
        %v2160 = vpack.c.b16 %v1847, %v1846
        %v2161 = vpack.c.b16 %v1849, %v1848
        %v2162 = vpack.c.b16 %v1851, %v1850
        %v2163 = vpack.c.b16 %v1853, %v1852
        %v2164 = vpack.c.b16 %v1855, %v1854
        %v2165 = vpack.c.b16 %v1857, %v1856
        %v2166 = vpack.c.b16 %v1859, %v1858
        %v2167 = vpack.c.b16 %v1861, %v1860
        %v2168 = vpack.c.b16 %v1863, %v1862
        %v2169 = vpack.c.b16 %v1865, %v1864
        %v2170 = vpack.c.b16 %v1867, %v1866
        %v2171 = vpack.c.b16 %v1869, %v1868
        %v2172 = vpack.c.b16 %v1871, %v1870
        %v2173 = vpack.c.b16 %v1873, %v1872
        %v2174 = vpack.c.b16 %v1875, %v1874
        %v2175 = vpack.c.b16 %v1877, %v1876
        %v2176 = vpack.c.b16 %v1879, %v1878
        %v2177 = vpack.c.b16 %v1881, %v1880
        %v2178 = vpack.c.b16 %v1883, %v1882
        %v2179 = vpack.c.b16 %v1885, %v1884
        %v2180 = vpack.c.b16 %v1887, %v1886
        %v2181 = vpack.c.b16 %v1889, %v1888
        %v2182 = vpack.c.b16 %v1891, %v1890
        %v2183 = vpack.c.b16 %v1893, %v1892
        %v2184 = vpack.c.b16 %v1895, %v1894
        %v2185 = vpack.c.b16 %v1897, %v1896
        %v2186 = vpack.c.b16 %v1899, %v1898
        %v2187 = vpack.c.b16 %v1901, %v1900
        %v2188 = vpack.c.b16 %v1903, %v1902
        %v2189 = vpack.c.b16 %v1905, %v1904
        %v2190 = vpack.c.b16 %v1907, %v1906
        %v2191 = vpack.c.b16 %v1909, %v1908
        %v2192 = vpack.c.b16 %v1911, %v1910
        %v2193 = vpack.c.b16 %v1913, %v1912
        %v2194 = vpack.c.b16 %v1915, %v1914
        %v2195 = vpack.c.b16 %v1917, %v1916
        %v2196 = vpack.c.b16 %v1919, %v1918
        %v2197 = vpack.c.b16 %v1921, %v1920
        %v2198 = vpack.c.b16 %v1923, %v1922
        %v2199 = vpack.c.b16 %v1925, %v1924
        %v2200 = vpack.c.b16 %v1927, %v1926
        %v2201 = vpack.c.b16 %v1929, %v1928
        %v2202 = vpack.c.b16 %v1931, %v1930
        %v2203 = vpack.c.b16 %v1933, %v1932
        %v2204 = vpack.c.b16 %v1935, %v1934
        %v2205 = vpack.c.b16 %v1937, %v1936
        %v2206 = vpack.c.b16 %v1939, %v1938
        %v2207 = vpack.c.b16 %v1941, %v1940
        %v2208 = vpack.c.b16 %v1943, %v1942
        %v2209 = vpack.c.b16 %v1945, %v1944
        %v2210 = vpack.c.b16 %v1947, %v1946
        %v2211 = vpack.c.b16 %v1949, %v1948
        %v2212 = vpack.c.b16 %v1951, %v1950
        %v2213 = vpack.c.b16 %v1953, %v1952
        %v2214 = vpack.c.b16 %v1955, %v1954
        %v2215 = vpack.c.b16 %v1957, %v1956
        %v2216 = vpack.c.b16 %v1959, %v1958
        %v2217 = vpack.c.b16 %v1961, %v1960
        %2474 = vmatprep.subr.bf16.mxu0 0
        %2475 = vmatpush1.bf16.msra.mxu0 %v1969
        %2476 = vmatprep.subr.bf16.mxu0 0
        %2477 = vmatpush1.bf16.msra.mxu0 %v1968
        %2478 = vmatprep.subr.bf16.mxu0 0
        %2479 = vmatpush1.bf16.msra.mxu0 %v1967
        %2480 = vmatprep.subr.bf16.mxu0 0
        %2481 = vmatpush1.bf16.msra.mxu0 %v1966
        %2482 = vmatprep.subr.bf16.mxu0 0
        %2483 = vmatpush1.bf16.msra.mxu0 %v1965
        %2484 = vmatprep.subr.bf16.mxu0 0
        %2485 = vmatpush1.bf16.msra.mxu0 %v1964
        %2486 = vmatprep.subr.bf16.mxu0 0
        %2487 = vmatpush1.bf16.msra.mxu0 %v1963
        %2488 = vmatprep.subr.bf16.mxu0 0
        %2489 = vmatpush1.bf16.msra.mxu0 %v1962
        %2490 = vmatprep.subr.bf16.mxu0 0
        %2491 = vmatpush2.bf16.msra.mxu0 %v1977
        %2492 = vmatprep.subr.bf16.mxu0 0
        %2493 = vmatpush2.bf16.msra.mxu0 %v1976
        %2494 = vmatprep.subr.bf16.mxu0 0
        %2495 = vmatpush2.bf16.msra.mxu0 %v1975
        %2496 = vmatprep.subr.bf16.mxu0 0
        %2497 = vmatpush2.bf16.msra.mxu0 %v1974
        %2498 = vmatprep.subr.bf16.mxu0 0
        %2499 = vmatpush2.bf16.msra.mxu0 %v1973
        %2500 = vmatprep.subr.bf16.mxu0 0
        %2501 = vmatpush2.bf16.msra.mxu0 %v1972
        %2502 = vmatprep.subr.bf16.mxu0 0
        %2503 = vmatpush2.bf16.msra.mxu0 %v1971
        %2504 = vmatprep.subr.bf16.mxu0 0
        %2505 = vmatpush2.bf16.msra.mxu0 %v1970
        %2506 = vmatprep.mubr.bf16.mxu0 %v395
        %2507 = vmatmul.mubr.bf16.gmra.mxu0 %v394
        %v2508 = vpop.f32.mrf.mxu0
        %v2509 = vadd.f32 0.0, %v2508
        %v2510 = vpop.f32.mrf.mxu0
        %v2511 = vpop.f32.mrf.mxu0
        %v2512 = vpop.f32.mrf.mxu0
        %2513 = vdwg.mxu0
        %2514 = vmatprep.subr.bf16.mxu0 0
        %2515 = vmatpush1.bf16.msra.mxu0 %v1985
        %2516 = vmatprep.subr.bf16.mxu0 0
        %2517 = vmatpush1.bf16.msra.mxu0 %v1984
        %2518 = vmatprep.subr.bf16.mxu0 0
        %2519 = vmatpush1.bf16.msra.mxu0 %v1983
        %2520 = vmatprep.subr.bf16.mxu0 0
        %2521 = vmatpush1.bf16.msra.mxu0 %v1982
        %2522 = vmatprep.subr.bf16.mxu0 0
        %2523 = vmatpush1.bf16.msra.mxu0 %v1981
        %2524 = vmatprep.subr.bf16.mxu0 0
        %2525 = vmatpush1.bf16.msra.mxu0 %v1980
        %2526 = vmatprep.subr.bf16.mxu0 0
        %2527 = vmatpush1.bf16.msra.mxu0 %v1979
        %2528 = vmatprep.subr.bf16.mxu0 0
        %2529 = vmatpush1.bf16.msra.mxu0 %v1978
        %2530 = vmatprep.subr.bf16.mxu0 0
        %2531 = vmatpush2.bf16.msra.mxu0 %v1993
        %2532 = vmatprep.subr.bf16.mxu0 0
        %2533 = vmatpush2.bf16.msra.mxu0 %v1992
        %2534 = vmatprep.subr.bf16.mxu0 0
        %2535 = vmatpush2.bf16.msra.mxu0 %v1991
        %2536 = vmatprep.subr.bf16.mxu0 0
        %2537 = vmatpush2.bf16.msra.mxu0 %v1990
        %2538 = vmatprep.subr.bf16.mxu0 0
        %2539 = vmatpush2.bf16.msra.mxu0 %v1989
        %2540 = vmatprep.subr.bf16.mxu0 0
        %2541 = vmatpush2.bf16.msra.mxu0 %v1988
        %2542 = vmatprep.subr.bf16.mxu0 0
        %2543 = vmatpush2.bf16.msra.mxu0 %v1987
        %2544 = vmatprep.subr.bf16.mxu0 0
        %2545 = vmatpush2.bf16.msra.mxu0 %v1986
        %2546 = vmatprep.mubr.bf16.mxu0 %v397
        %2547 = vmatmul.mubr.bf16.gmra.mxu0 %v396
        %v2548 = vpop.f32.mrf.mxu0
        %v2549 = vadd.f32 %v2509, %v2548
        %v2550 = vpop.f32.mrf.mxu0
        %v2551 = vpop.f32.mrf.mxu0
        %v2552 = vpop.f32.mrf.mxu0
        %2553 = vdwg.mxu0
        %2554 = vmatprep.subr.bf16.mxu0 0
        %2555 = vmatpush1.bf16.msra.mxu0 %v2001
        %2556 = vmatprep.subr.bf16.mxu0 0
        %2557 = vmatpush1.bf16.msra.mxu0 %v2000
        %2558 = vmatprep.subr.bf16.mxu0 0
        %2559 = vmatpush1.bf16.msra.mxu0 %v1999
        %2560 = vmatprep.subr.bf16.mxu0 0
        %2561 = vmatpush1.bf16.msra.mxu0 %v1998
        %2562 = vmatprep.subr.bf16.mxu0 0
        %2563 = vmatpush1.bf16.msra.mxu0 %v1997
        %2564 = vmatprep.subr.bf16.mxu0 0
        %2565 = vmatpush1.bf16.msra.mxu0 %v1996
        %2566 = vmatprep.subr.bf16.mxu0 0
        %2567 = vmatpush1.bf16.msra.mxu0 %v1995
        %2568 = vmatprep.subr.bf16.mxu0 0
        %2569 = vmatpush1.bf16.msra.mxu0 %v1994
        %2570 = vmatprep.subr.bf16.mxu0 0
        %2571 = vmatpush2.bf16.msra.mxu0 %v2009
        %2572 = vmatprep.subr.bf16.mxu0 0
        %2573 = vmatpush2.bf16.msra.mxu0 %v2008
        %2574 = vmatprep.subr.bf16.mxu0 0
        %2575 = vmatpush2.bf16.msra.mxu0 %v2007
        %2576 = vmatprep.subr.bf16.mxu0 0
        %2577 = vmatpush2.bf16.msra.mxu0 %v2006
        %2578 = vmatprep.subr.bf16.mxu0 0
        %2579 = vmatpush2.bf16.msra.mxu0 %v2005
        %2580 = vmatprep.subr.bf16.mxu0 0
        %2581 = vmatpush2.bf16.msra.mxu0 %v2004
        %2582 = vmatprep.subr.bf16.mxu0 0
        %2583 = vmatpush2.bf16.msra.mxu0 %v2003
        %2584 = vmatprep.subr.bf16.mxu0 0
        %2585 = vmatpush2.bf16.msra.mxu0 %v2002
        %2586 = vmatprep.mubr.bf16.mxu0 %v399
        %2587 = vmatmul.mubr.bf16.gmra.mxu0 %v398
        %v2588 = vpop.f32.mrf.mxu0
        %v2589 = vadd.f32 %v2549, %v2588
        %v2590 = vpop.f32.mrf.mxu0
        %v2591 = vpop.f32.mrf.mxu0
        %v2592 = vpop.f32.mrf.mxu0
        %2593 = vdwg.mxu0
        %2594 = vmatprep.subr.bf16.mxu0 0
        %2595 = vmatpush1.bf16.msra.mxu0 %v2017
        %2596 = vmatprep.subr.bf16.mxu0 0
        %2597 = vmatpush1.bf16.msra.mxu0 %v2016
        %2598 = vmatprep.subr.bf16.mxu0 0
        %2599 = vmatpush1.bf16.msra.mxu0 %v2015
        %2600 = vmatprep.subr.bf16.mxu0 0
        %2601 = vmatpush1.bf16.msra.mxu0 %v2014
        %2602 = vmatprep.subr.bf16.mxu0 0
        %2603 = vmatpush1.bf16.msra.mxu0 %v2013
        %2604 = vmatprep.subr.bf16.mxu0 0
        %2605 = vmatpush1.bf16.msra.mxu0 %v2012
        %2606 = vmatprep.subr.bf16.mxu0 0
        %2607 = vmatpush1.bf16.msra.mxu0 %v2011
        %2608 = vmatprep.subr.bf16.mxu0 0
        %2609 = vmatpush1.bf16.msra.mxu0 %v2010
        %2610 = vmatprep.subr.bf16.mxu0 0
        %2611 = vmatpush2.bf16.msra.mxu0 %v2025
        %2612 = vmatprep.subr.bf16.mxu0 0
        %2613 = vmatpush2.bf16.msra.mxu0 %v2024
        %2614 = vmatprep.subr.bf16.mxu0 0
        %2615 = vmatpush2.bf16.msra.mxu0 %v2023
        %2616 = vmatprep.subr.bf16.mxu0 0
        %2617 = vmatpush2.bf16.msra.mxu0 %v2022
        %2618 = vmatprep.subr.bf16.mxu0 0
        %2619 = vmatpush2.bf16.msra.mxu0 %v2021
        %2620 = vmatprep.subr.bf16.mxu0 0
        %2621 = vmatpush2.bf16.msra.mxu0 %v2020
        %2622 = vmatprep.subr.bf16.mxu0 0
        %2623 = vmatpush2.bf16.msra.mxu0 %v2019
        %2624 = vmatprep.subr.bf16.mxu0 0
        %2625 = vmatpush2.bf16.msra.mxu0 %v2018
        %2626 = vmatprep.mubr.bf16.mxu0 %v401
        %2627 = vmatmul.mubr.bf16.gmra.mxu0 %v400
        %v2628 = vpop.f32.mrf.mxu0
        %v2629 = vadd.f32 %v2589, %v2628
        %v2630 = vpop.f32.mrf.mxu0
        %v2631 = vpop.f32.mrf.mxu0
        %v2632 = vpop.f32.mrf.mxu0
        %2633 = vdwg.mxu0
        %2634 = vmatprep.subr.bf16.mxu0 0
        %2635 = vmatpush1.bf16.msra.mxu0 %v2033
        %2636 = vmatprep.subr.bf16.mxu0 0
        %2637 = vmatpush1.bf16.msra.mxu0 %v2032
        %2638 = vmatprep.subr.bf16.mxu0 0
        %2639 = vmatpush1.bf16.msra.mxu0 %v2031
        %2640 = vmatprep.subr.bf16.mxu0 0
        %2641 = vmatpush1.bf16.msra.mxu0 %v2030
        %2642 = vmatprep.subr.bf16.mxu0 0
        %2643 = vmatpush1.bf16.msra.mxu0 %v2029
        %2644 = vmatprep.subr.bf16.mxu0 0
        %2645 = vmatpush1.bf16.msra.mxu0 %v2028
        %2646 = vmatprep.subr.bf16.mxu0 0
        %2647 = vmatpush1.bf16.msra.mxu0 %v2027
        %2648 = vmatprep.subr.bf16.mxu0 0
        %2649 = vmatpush1.bf16.msra.mxu0 %v2026
        %2650 = vmatprep.subr.bf16.mxu0 0
        %2651 = vmatpush2.bf16.msra.mxu0 %v2041
        %2652 = vmatprep.subr.bf16.mxu0 0
        %2653 = vmatpush2.bf16.msra.mxu0 %v2040
        %2654 = vmatprep.subr.bf16.mxu0 0
        %2655 = vmatpush2.bf16.msra.mxu0 %v2039
        %2656 = vmatprep.subr.bf16.mxu0 0
        %2657 = vmatpush2.bf16.msra.mxu0 %v2038
        %2658 = vmatprep.subr.bf16.mxu0 0
        %2659 = vmatpush2.bf16.msra.mxu0 %v2037
        %2660 = vmatprep.subr.bf16.mxu0 0
        %2661 = vmatpush2.bf16.msra.mxu0 %v2036
        %2662 = vmatprep.subr.bf16.mxu0 0
        %2663 = vmatpush2.bf16.msra.mxu0 %v2035
        %2664 = vmatprep.subr.bf16.mxu0 0
        %2665 = vmatpush2.bf16.msra.mxu0 %v2034
        %2666 = vmatprep.mubr.bf16.mxu0 %v403
        %2667 = vmatmul.mubr.bf16.gmra.mxu0 %v402
        %v2668 = vpop.f32.mrf.mxu0
        %v2669 = vadd.f32 %v2629, %v2668
        %v2670 = vpop.f32.mrf.mxu0
        %v2671 = vpop.f32.mrf.mxu0
        %v2672 = vpop.f32.mrf.mxu0
        %2673 = vdwg.mxu0
        %2674 = vmatprep.subr.bf16.mxu0 0
        %2675 = vmatpush1.bf16.msra.mxu0 %v2049
        %2676 = vmatprep.subr.bf16.mxu0 0
        %2677 = vmatpush1.bf16.msra.mxu0 %v2048
        %2678 = vmatprep.subr.bf16.mxu0 0
        %2679 = vmatpush1.bf16.msra.mxu0 %v2047
        %2680 = vmatprep.subr.bf16.mxu0 0
        %2681 = vmatpush1.bf16.msra.mxu0 %v2046
        %2682 = vmatprep.subr.bf16.mxu0 0
        %2683 = vmatpush1.bf16.msra.mxu0 %v2045
        %2684 = vmatprep.subr.bf16.mxu0 0
        %2685 = vmatpush1.bf16.msra.mxu0 %v2044
        %2686 = vmatprep.subr.bf16.mxu0 0
        %2687 = vmatpush1.bf16.msra.mxu0 %v2043
        %2688 = vmatprep.subr.bf16.mxu0 0
        %2689 = vmatpush1.bf16.msra.mxu0 %v2042
        %2690 = vmatprep.subr.bf16.mxu0 0
        %2691 = vmatpush2.bf16.msra.mxu0 %v2057
        %2692 = vmatprep.subr.bf16.mxu0 0
        %2693 = vmatpush2.bf16.msra.mxu0 %v2056
        %2694 = vmatprep.subr.bf16.mxu0 0
        %2695 = vmatpush2.bf16.msra.mxu0 %v2055
        %2696 = vmatprep.subr.bf16.mxu0 0
        %2697 = vmatpush2.bf16.msra.mxu0 %v2054
        %2698 = vmatprep.subr.bf16.mxu0 0
        %2699 = vmatpush2.bf16.msra.mxu0 %v2053
        %2700 = vmatprep.subr.bf16.mxu0 0
        %2701 = vmatpush2.bf16.msra.mxu0 %v2052
        %2702 = vmatprep.subr.bf16.mxu0 0
        %2703 = vmatpush2.bf16.msra.mxu0 %v2051
        %2704 = vmatprep.subr.bf16.mxu0 0
        %2705 = vmatpush2.bf16.msra.mxu0 %v2050
        %2706 = vmatprep.mubr.bf16.mxu0 %v405
        %2707 = vmatmul.mubr.bf16.gmra.mxu0 %v404
        %v2708 = vpop.f32.mrf.mxu0
        %v2709 = vadd.f32 %v2669, %v2708
        %v2710 = vpop.f32.mrf.mxu0
        %v2711 = vpop.f32.mrf.mxu0
        %v2712 = vpop.f32.mrf.mxu0
        %2713 = vdwg.mxu0
        %2714 = vmatprep.subr.bf16.mxu0 0
        %2715 = vmatpush1.bf16.msra.mxu0 %v2065
        %2716 = vmatprep.subr.bf16.mxu0 0
        %2717 = vmatpush1.bf16.msra.mxu0 %v2064
        %2718 = vmatprep.subr.bf16.mxu0 0
        %2719 = vmatpush1.bf16.msra.mxu0 %v2063
        %2720 = vmatprep.subr.bf16.mxu0 0
        %2721 = vmatpush1.bf16.msra.mxu0 %v2062
        %2722 = vmatprep.subr.bf16.mxu0 0
        %2723 = vmatpush1.bf16.msra.mxu0 %v2061
        %2724 = vmatprep.subr.bf16.mxu0 0
        %2725 = vmatpush1.bf16.msra.mxu0 %v2060
        %2726 = vmatprep.subr.bf16.mxu0 0
        %2727 = vmatpush1.bf16.msra.mxu0 %v2059
        %2728 = vmatprep.subr.bf16.mxu0 0
        %2729 = vmatpush1.bf16.msra.mxu0 %v2058
        %2730 = vmatprep.subr.bf16.mxu0 0
        %2731 = vmatpush2.bf16.msra.mxu0 %v2073
        %2732 = vmatprep.subr.bf16.mxu0 0
        %2733 = vmatpush2.bf16.msra.mxu0 %v2072
        %2734 = vmatprep.subr.bf16.mxu0 0
        %2735 = vmatpush2.bf16.msra.mxu0 %v2071
        %2736 = vmatprep.subr.bf16.mxu0 0
        %2737 = vmatpush2.bf16.msra.mxu0 %v2070
        %2738 = vmatprep.subr.bf16.mxu0 0
        %2739 = vmatpush2.bf16.msra.mxu0 %v2069
        %2740 = vmatprep.subr.bf16.mxu0 0
        %2741 = vmatpush2.bf16.msra.mxu0 %v2068
        %2742 = vmatprep.subr.bf16.mxu0 0
        %2743 = vmatpush2.bf16.msra.mxu0 %v2067
        %2744 = vmatprep.subr.bf16.mxu0 0
        %2745 = vmatpush2.bf16.msra.mxu0 %v2066
        %2746 = vmatprep.mubr.bf16.mxu0 %v407
        %2747 = vmatmul.mubr.bf16.gmra.mxu0 %v406
        %v2748 = vpop.f32.mrf.mxu0
        %v2749 = vadd.f32 %v2709, %v2748
        %v2750 = vpop.f32.mrf.mxu0
        %v2751 = vpop.f32.mrf.mxu0
        %v2752 = vpop.f32.mrf.mxu0
        %2753 = vdwg.mxu0
        %2754 = vmatprep.subr.bf16.mxu0 0
        %2755 = vmatpush1.bf16.msra.mxu0 %v2081
        %2756 = vmatprep.subr.bf16.mxu0 0
        %2757 = vmatpush1.bf16.msra.mxu0 %v2080
        %2758 = vmatprep.subr.bf16.mxu0 0
        %2759 = vmatpush1.bf16.msra.mxu0 %v2079
        %2760 = vmatprep.subr.bf16.mxu0 0
        %2761 = vmatpush1.bf16.msra.mxu0 %v2078
        %2762 = vmatprep.subr.bf16.mxu0 0
        %2763 = vmatpush1.bf16.msra.mxu0 %v2077
        %2764 = vmatprep.subr.bf16.mxu0 0
        %2765 = vmatpush1.bf16.msra.mxu0 %v2076
        %2766 = vmatprep.subr.bf16.mxu0 0
        %2767 = vmatpush1.bf16.msra.mxu0 %v2075
        %2768 = vmatprep.subr.bf16.mxu0 0
        %2769 = vmatpush1.bf16.msra.mxu0 %v2074
        %2770 = vmatprep.subr.bf16.mxu0 0
        %2771 = vmatpush2.bf16.msra.mxu0 %v2089
        %2772 = vmatprep.subr.bf16.mxu0 0
        %2773 = vmatpush2.bf16.msra.mxu0 %v2088
        %2774 = vmatprep.subr.bf16.mxu0 0
        %2775 = vmatpush2.bf16.msra.mxu0 %v2087
        %2776 = vmatprep.subr.bf16.mxu0 0
        %2777 = vmatpush2.bf16.msra.mxu0 %v2086
        %2778 = vmatprep.subr.bf16.mxu0 0
        %2779 = vmatpush2.bf16.msra.mxu0 %v2085
        %2780 = vmatprep.subr.bf16.mxu0 0
        %2781 = vmatpush2.bf16.msra.mxu0 %v2084
        %2782 = vmatprep.subr.bf16.mxu0 0
        %2783 = vmatpush2.bf16.msra.mxu0 %v2083
        %2784 = vmatprep.subr.bf16.mxu0 0
        %2785 = vmatpush2.bf16.msra.mxu0 %v2082
        %2786 = vmatprep.mubr.bf16.mxu0 %v409
        %2787 = vmatmul.mubr.bf16.gmra.mxu0 %v408
        %v2788 = vpop.f32.mrf.mxu0
        %v2789 = vadd.f32 %v2749, %v2788
        %v2790 = vpop.f32.mrf.mxu0
        %v2791 = vpop.f32.mrf.mxu0
        %v2792 = vpop.f32.mrf.mxu0
        %2793 = vdwg.mxu0
        %2794 = vmatprep.subr.bf16.mxu0 0
        %2795 = vmatpush1.bf16.msra.mxu0 %v2097
        %2796 = vmatprep.subr.bf16.mxu0 0
        %2797 = vmatpush1.bf16.msra.mxu0 %v2096
        %2798 = vmatprep.subr.bf16.mxu0 0
        %2799 = vmatpush1.bf16.msra.mxu0 %v2095
        %2800 = vmatprep.subr.bf16.mxu0 0
        %2801 = vmatpush1.bf16.msra.mxu0 %v2094
        %2802 = vmatprep.subr.bf16.mxu0 0
        %2803 = vmatpush1.bf16.msra.mxu0 %v2093
        %2804 = vmatprep.subr.bf16.mxu0 0
        %2805 = vmatpush1.bf16.msra.mxu0 %v2092
        %2806 = vmatprep.subr.bf16.mxu0 0
        %2807 = vmatpush1.bf16.msra.mxu0 %v2091
        %2808 = vmatprep.subr.bf16.mxu0 0
        %2809 = vmatpush1.bf16.msra.mxu0 %v2090
        %2810 = vmatprep.subr.bf16.mxu0 0
        %2811 = vmatpush2.bf16.msra.mxu0 %v2105
        %2812 = vmatprep.subr.bf16.mxu0 0
        %2813 = vmatpush2.bf16.msra.mxu0 %v2104
        %2814 = vmatprep.subr.bf16.mxu0 0
        %2815 = vmatpush2.bf16.msra.mxu0 %v2103
        %2816 = vmatprep.subr.bf16.mxu0 0
        %2817 = vmatpush2.bf16.msra.mxu0 %v2102
        %2818 = vmatprep.subr.bf16.mxu0 0
        %2819 = vmatpush2.bf16.msra.mxu0 %v2101
        %2820 = vmatprep.subr.bf16.mxu0 0
        %2821 = vmatpush2.bf16.msra.mxu0 %v2100
        %2822 = vmatprep.subr.bf16.mxu0 0
        %2823 = vmatpush2.bf16.msra.mxu0 %v2099
        %2824 = vmatprep.subr.bf16.mxu0 0
        %2825 = vmatpush2.bf16.msra.mxu0 %v2098
        %2826 = vmatprep.mubr.bf16.mxu0 %v411
        %2827 = vmatmul.mubr.bf16.gmra.mxu0 %v410
        %v2828 = vpop.f32.mrf.mxu0
        %v2829 = vadd.f32 %v2789, %v2828
        %v2830 = vpop.f32.mrf.mxu0
        %v2831 = vpop.f32.mrf.mxu0
        %v2832 = vpop.f32.mrf.mxu0
        %2833 = vdwg.mxu0
        %2834 = vmatprep.subr.bf16.mxu0 0
        %2835 = vmatpush1.bf16.msra.mxu0 %v2113
        %2836 = vmatprep.subr.bf16.mxu0 0
        %2837 = vmatpush1.bf16.msra.mxu0 %v2112
        %2838 = vmatprep.subr.bf16.mxu0 0
        %2839 = vmatpush1.bf16.msra.mxu0 %v2111
        %2840 = vmatprep.subr.bf16.mxu0 0
        %2841 = vmatpush1.bf16.msra.mxu0 %v2110
        %2842 = vmatprep.subr.bf16.mxu0 0
        %2843 = vmatpush1.bf16.msra.mxu0 %v2109
        %2844 = vmatprep.subr.bf16.mxu0 0
        %2845 = vmatpush1.bf16.msra.mxu0 %v2108
        %2846 = vmatprep.subr.bf16.mxu0 0
        %2847 = vmatpush1.bf16.msra.mxu0 %v2107
        %2848 = vmatprep.subr.bf16.mxu0 0
        %2849 = vmatpush1.bf16.msra.mxu0 %v2106
        %2850 = vmatprep.subr.bf16.mxu0 0
        %2851 = vmatpush2.bf16.msra.mxu0 %v2121
        %2852 = vmatprep.subr.bf16.mxu0 0
        %2853 = vmatpush2.bf16.msra.mxu0 %v2120
        %2854 = vmatprep.subr.bf16.mxu0 0
        %2855 = vmatpush2.bf16.msra.mxu0 %v2119
        %2856 = vmatprep.subr.bf16.mxu0 0
        %2857 = vmatpush2.bf16.msra.mxu0 %v2118
        %2858 = vmatprep.subr.bf16.mxu0 0
        %2859 = vmatpush2.bf16.msra.mxu0 %v2117
        %2860 = vmatprep.subr.bf16.mxu0 0
        %2861 = vmatpush2.bf16.msra.mxu0 %v2116
        %2862 = vmatprep.subr.bf16.mxu0 0
        %2863 = vmatpush2.bf16.msra.mxu0 %v2115
        %2864 = vmatprep.subr.bf16.mxu0 0
        %2865 = vmatpush2.bf16.msra.mxu0 %v2114
        %2866 = vmatprep.mubr.bf16.mxu0 %v413
        %2867 = vmatmul.mubr.bf16.gmra.mxu0 %v412
        %v2868 = vpop.f32.mrf.mxu0
        %v2869 = vadd.f32 %v2829, %v2868
        %v2870 = vpop.f32.mrf.mxu0
        %v2871 = vpop.f32.mrf.mxu0
        %v2872 = vpop.f32.mrf.mxu0
        %2873 = vdwg.mxu0
        %2874 = vmatprep.subr.bf16.mxu0 0
        %2875 = vmatpush1.bf16.msra.mxu0 %v2129
        %2876 = vmatprep.subr.bf16.mxu0 0
        %2877 = vmatpush1.bf16.msra.mxu0 %v2128
        %2878 = vmatprep.subr.bf16.mxu0 0
        %2879 = vmatpush1.bf16.msra.mxu0 %v2127
        %2880 = vmatprep.subr.bf16.mxu0 0
        %2881 = vmatpush1.bf16.msra.mxu0 %v2126
        %2882 = vmatprep.subr.bf16.mxu0 0
        %2883 = vmatpush1.bf16.msra.mxu0 %v2125
        %2884 = vmatprep.subr.bf16.mxu0 0
        %2885 = vmatpush1.bf16.msra.mxu0 %v2124
        %2886 = vmatprep.subr.bf16.mxu0 0
        %2887 = vmatpush1.bf16.msra.mxu0 %v2123
        %2888 = vmatprep.subr.bf16.mxu0 0
        %2889 = vmatpush1.bf16.msra.mxu0 %v2122
        %2890 = vmatprep.subr.bf16.mxu0 0
        %2891 = vmatpush2.bf16.msra.mxu0 %v2137
        %2892 = vmatprep.subr.bf16.mxu0 0
        %2893 = vmatpush2.bf16.msra.mxu0 %v2136
        %2894 = vmatprep.subr.bf16.mxu0 0
        %2895 = vmatpush2.bf16.msra.mxu0 %v2135
        %2896 = vmatprep.subr.bf16.mxu0 0
        %2897 = vmatpush2.bf16.msra.mxu0 %v2134
        %2898 = vmatprep.subr.bf16.mxu0 0
        %2899 = vmatpush2.bf16.msra.mxu0 %v2133
        %2900 = vmatprep.subr.bf16.mxu0 0
        %2901 = vmatpush2.bf16.msra.mxu0 %v2132
        %2902 = vmatprep.subr.bf16.mxu0 0
        %2903 = vmatpush2.bf16.msra.mxu0 %v2131
        %2904 = vmatprep.subr.bf16.mxu0 0
        %2905 = vmatpush2.bf16.msra.mxu0 %v2130
        %2906 = vmatprep.mubr.bf16.mxu0 %v415
        %2907 = vmatmul.mubr.bf16.gmra.mxu0 %v414
        %v2908 = vpop.f32.mrf.mxu0
        %v2909 = vadd.f32 %v2869, %v2908
        %v2910 = vpop.f32.mrf.mxu0
        %v2911 = vpop.f32.mrf.mxu0
        %v2912 = vpop.f32.mrf.mxu0
        %2913 = vdwg.mxu0
        %2914 = vmatprep.subr.bf16.mxu0 0
        %2915 = vmatpush1.bf16.msra.mxu0 %v2145
        %2916 = vmatprep.subr.bf16.mxu0 0
        %2917 = vmatpush1.bf16.msra.mxu0 %v2144
        %2918 = vmatprep.subr.bf16.mxu0 0
        %2919 = vmatpush1.bf16.msra.mxu0 %v2143
        %2920 = vmatprep.subr.bf16.mxu0 0
        %2921 = vmatpush1.bf16.msra.mxu0 %v2142
        %2922 = vmatprep.subr.bf16.mxu0 0
        %2923 = vmatpush1.bf16.msra.mxu0 %v2141
        %2924 = vmatprep.subr.bf16.mxu0 0
        %2925 = vmatpush1.bf16.msra.mxu0 %v2140
        %2926 = vmatprep.subr.bf16.mxu0 0
        %2927 = vmatpush1.bf16.msra.mxu0 %v2139
        %2928 = vmatprep.subr.bf16.mxu0 0
        %2929 = vmatpush1.bf16.msra.mxu0 %v2138
        %2930 = vmatprep.subr.bf16.mxu0 0
        %2931 = vmatpush2.bf16.msra.mxu0 %v2153
        %2932 = vmatprep.subr.bf16.mxu0 0
        %2933 = vmatpush2.bf16.msra.mxu0 %v2152
        %2934 = vmatprep.subr.bf16.mxu0 0
        %2935 = vmatpush2.bf16.msra.mxu0 %v2151
        %2936 = vmatprep.subr.bf16.mxu0 0
        %2937 = vmatpush2.bf16.msra.mxu0 %v2150
        %2938 = vmatprep.subr.bf16.mxu0 0
        %2939 = vmatpush2.bf16.msra.mxu0 %v2149
        %2940 = vmatprep.subr.bf16.mxu0 0
        %2941 = vmatpush2.bf16.msra.mxu0 %v2148
        %2942 = vmatprep.subr.bf16.mxu0 0
        %2943 = vmatpush2.bf16.msra.mxu0 %v2147
        %2944 = vmatprep.subr.bf16.mxu0 0
        %2945 = vmatpush2.bf16.msra.mxu0 %v2146
        %2946 = vmatprep.mubr.bf16.mxu0 %v417
        %2947 = vmatmul.mubr.bf16.gmra.mxu0 %v416
        %v2948 = vpop.f32.mrf.mxu0
        %v2949 = vadd.f32 %v2909, %v2948
        %v2950 = vpop.f32.mrf.mxu0
        %v2951 = vpop.f32.mrf.mxu0
        %v2952 = vpop.f32.mrf.mxu0
        %2953 = vdwg.mxu0
        %2954 = vmatprep.subr.bf16.mxu0 0
        %2955 = vmatpush1.bf16.msra.mxu0 %v2161
        %2956 = vmatprep.subr.bf16.mxu0 0
        %2957 = vmatpush1.bf16.msra.mxu0 %v2160
        %2958 = vmatprep.subr.bf16.mxu0 0
        %2959 = vmatpush1.bf16.msra.mxu0 %v2159
        %2960 = vmatprep.subr.bf16.mxu0 0
        %2961 = vmatpush1.bf16.msra.mxu0 %v2158
        %2962 = vmatprep.subr.bf16.mxu0 0
        %2963 = vmatpush1.bf16.msra.mxu0 %v2157
        %2964 = vmatprep.subr.bf16.mxu0 0
        %2965 = vmatpush1.bf16.msra.mxu0 %v2156
        %2966 = vmatprep.subr.bf16.mxu0 0
        %2967 = vmatpush1.bf16.msra.mxu0 %v2155
        %2968 = vmatprep.subr.bf16.mxu0 0
        %2969 = vmatpush1.bf16.msra.mxu0 %v2154
        %2970 = vmatprep.subr.bf16.mxu0 0
        %2971 = vmatpush2.bf16.msra.mxu0 %v2169
        %2972 = vmatprep.subr.bf16.mxu0 0
        %2973 = vmatpush2.bf16.msra.mxu0 %v2168
        %2974 = vmatprep.subr.bf16.mxu0 0
        %2975 = vmatpush2.bf16.msra.mxu0 %v2167
        %2976 = vmatprep.subr.bf16.mxu0 0
        %2977 = vmatpush2.bf16.msra.mxu0 %v2166
        %2978 = vmatprep.subr.bf16.mxu0 0
        %2979 = vmatpush2.bf16.msra.mxu0 %v2165
        %2980 = vmatprep.subr.bf16.mxu0 0
        %2981 = vmatpush2.bf16.msra.mxu0 %v2164
        %2982 = vmatprep.subr.bf16.mxu0 0
        %2983 = vmatpush2.bf16.msra.mxu0 %v2163
        %2984 = vmatprep.subr.bf16.mxu0 0
        %2985 = vmatpush2.bf16.msra.mxu0 %v2162
        %2986 = vmatprep.mubr.bf16.mxu0 %v419
        %2987 = vmatmul.mubr.bf16.gmra.mxu0 %v418
        %v2988 = vpop.f32.mrf.mxu0
        %v2989 = vadd.f32 %v2949, %v2988
        %v2990 = vpop.f32.mrf.mxu0
        %v2991 = vpop.f32.mrf.mxu0
        %v2992 = vpop.f32.mrf.mxu0
        %2993 = vdwg.mxu0
        %2994 = vmatprep.subr.bf16.mxu0 0
        %2995 = vmatpush1.bf16.msra.mxu0 %v2177
        %2996 = vmatprep.subr.bf16.mxu0 0
        %2997 = vmatpush1.bf16.msra.mxu0 %v2176
        %2998 = vmatprep.subr.bf16.mxu0 0
        %2999 = vmatpush1.bf16.msra.mxu0 %v2175
        %3000 = vmatprep.subr.bf16.mxu0 0
        %3001 = vmatpush1.bf16.msra.mxu0 %v2174
        %3002 = vmatprep.subr.bf16.mxu0 0
        %3003 = vmatpush1.bf16.msra.mxu0 %v2173
        %3004 = vmatprep.subr.bf16.mxu0 0
        %3005 = vmatpush1.bf16.msra.mxu0 %v2172
        %3006 = vmatprep.subr.bf16.mxu0 0
        %3007 = vmatpush1.bf16.msra.mxu0 %v2171
        %3008 = vmatprep.subr.bf16.mxu0 0
        %3009 = vmatpush1.bf16.msra.mxu0 %v2170
        %3010 = vmatprep.subr.bf16.mxu0 0
        %3011 = vmatpush2.bf16.msra.mxu0 %v2185
        %3012 = vmatprep.subr.bf16.mxu0 0
        %3013 = vmatpush2.bf16.msra.mxu0 %v2184
        %3014 = vmatprep.subr.bf16.mxu0 0
        %3015 = vmatpush2.bf16.msra.mxu0 %v2183
        %3016 = vmatprep.subr.bf16.mxu0 0
        %3017 = vmatpush2.bf16.msra.mxu0 %v2182
        %3018 = vmatprep.subr.bf16.mxu0 0
        %3019 = vmatpush2.bf16.msra.mxu0 %v2181
        %3020 = vmatprep.subr.bf16.mxu0 0
        %3021 = vmatpush2.bf16.msra.mxu0 %v2180
        %3022 = vmatprep.subr.bf16.mxu0 0
        %3023 = vmatpush2.bf16.msra.mxu0 %v2179
        %3024 = vmatprep.subr.bf16.mxu0 0
        %3025 = vmatpush2.bf16.msra.mxu0 %v2178
        %3026 = vmatprep.mubr.bf16.mxu0 %v421
        %3027 = vmatmul.mubr.bf16.gmra.mxu0 %v420
        %v3028 = vpop.f32.mrf.mxu0
        %v3029 = vadd.f32 %v2989, %v3028
        %v3030 = vpop.f32.mrf.mxu0
        %v3031 = vpop.f32.mrf.mxu0
        %v3032 = vpop.f32.mrf.mxu0
        %3033 = vdwg.mxu0
        %3034 = vmatprep.subr.bf16.mxu0 0
        %3035 = vmatpush1.bf16.msra.mxu0 %v2193
        %3036 = vmatprep.subr.bf16.mxu0 0
        %3037 = vmatpush1.bf16.msra.mxu0 %v2192
        %3038 = vmatprep.subr.bf16.mxu0 0
        %3039 = vmatpush1.bf16.msra.mxu0 %v2191
        %3040 = vmatprep.subr.bf16.mxu0 0
        %3041 = vmatpush1.bf16.msra.mxu0 %v2190
        %3042 = vmatprep.subr.bf16.mxu0 0
        %3043 = vmatpush1.bf16.msra.mxu0 %v2189
        %3044 = vmatprep.subr.bf16.mxu0 0
        %3045 = vmatpush1.bf16.msra.mxu0 %v2188
        %3046 = vmatprep.subr.bf16.mxu0 0
        %3047 = vmatpush1.bf16.msra.mxu0 %v2187
        %3048 = vmatprep.subr.bf16.mxu0 0
        %3049 = vmatpush1.bf16.msra.mxu0 %v2186
        %3050 = vmatprep.subr.bf16.mxu0 0
        %3051 = vmatpush2.bf16.msra.mxu0 %v2201
        %3052 = vmatprep.subr.bf16.mxu0 0
        %3053 = vmatpush2.bf16.msra.mxu0 %v2200
        %3054 = vmatprep.subr.bf16.mxu0 0
        %3055 = vmatpush2.bf16.msra.mxu0 %v2199
        %3056 = vmatprep.subr.bf16.mxu0 0
        %3057 = vmatpush2.bf16.msra.mxu0 %v2198
        %3058 = vmatprep.subr.bf16.mxu0 0
        %3059 = vmatpush2.bf16.msra.mxu0 %v2197
        %3060 = vmatprep.subr.bf16.mxu0 0
        %3061 = vmatpush2.bf16.msra.mxu0 %v2196
        %3062 = vmatprep.subr.bf16.mxu0 0
        %3063 = vmatpush2.bf16.msra.mxu0 %v2195
        %3064 = vmatprep.subr.bf16.mxu0 0
        %3065 = vmatpush2.bf16.msra.mxu0 %v2194
        %3066 = vmatprep.mubr.bf16.mxu0 %v423
        %3067 = vmatmul.mubr.bf16.gmra.mxu0 %v422
        %v3068 = vpop.f32.mrf.mxu0
        %v3069 = vadd.f32 %v3029, %v3068
        %v3070 = vpop.f32.mrf.mxu0
        %v3071 = vpop.f32.mrf.mxu0
        %v3072 = vpop.f32.mrf.mxu0
        %3073 = vdwg.mxu0
        %3074 = vmatprep.subr.bf16.mxu0 0
        %3075 = vmatpush1.bf16.msra.mxu0 %v2209
        %3076 = vmatprep.subr.bf16.mxu0 0
        %3077 = vmatpush1.bf16.msra.mxu0 %v2208
        %3078 = vmatprep.subr.bf16.mxu0 0
        %3079 = vmatpush1.bf16.msra.mxu0 %v2207
        %3080 = vmatprep.subr.bf16.mxu0 0
        %3081 = vmatpush1.bf16.msra.mxu0 %v2206
        %3082 = vmatprep.subr.bf16.mxu0 0
        %3083 = vmatpush1.bf16.msra.mxu0 %v2205
        %3084 = vmatprep.subr.bf16.mxu0 0
        %3085 = vmatpush1.bf16.msra.mxu0 %v2204
        %3086 = vmatprep.subr.bf16.mxu0 0
        %3087 = vmatpush1.bf16.msra.mxu0 %v2203
        %3088 = vmatprep.subr.bf16.mxu0 0
        %3089 = vmatpush1.bf16.msra.mxu0 %v2202
        %3090 = vmatprep.subr.bf16.mxu0 0
        %3091 = vmatpush2.bf16.msra.mxu0 %v2217
        %3092 = vmatprep.subr.bf16.mxu0 0
        %3093 = vmatpush2.bf16.msra.mxu0 %v2216
        %3094 = vmatprep.subr.bf16.mxu0 0
        %3095 = vmatpush2.bf16.msra.mxu0 %v2215
        %3096 = vmatprep.subr.bf16.mxu0 0
        %3097 = vmatpush2.bf16.msra.mxu0 %v2214
        %3098 = vmatprep.subr.bf16.mxu0 0
        %3099 = vmatpush2.bf16.msra.mxu0 %v2213
        %3100 = vmatprep.subr.bf16.mxu0 0
        %3101 = vmatpush2.bf16.msra.mxu0 %v2212
        %3102 = vmatprep.subr.bf16.mxu0 0
        %3103 = vmatpush2.bf16.msra.mxu0 %v2211
        %3104 = vmatprep.subr.bf16.mxu0 0
        %3105 = vmatpush2.bf16.msra.mxu0 %v2210
        %3106 = vmatprep.mubr.bf16.mxu0 %v425
        %3107 = vmatmul.mubr.bf16.gmra.mxu0 %v424
        %v3108 = vpop.f32.mrf.mxu0
        %v3109 = vadd.f32 %v3069, %v3108
        %v3110 = vpop.f32.mrf.mxu0
        %v3111 = vpop.f32.mrf.mxu0
        %v3112 = vpop.f32.mrf.mxu0
        %3113 = vdwg.mxu0
        %v3114 = vadd.f32 %v345, %v3109
        %3115 = vst [vmem:[#allocation2] sm:$0xf] %v3114
        %p3116 = scmp.eq.s32.totalorder %s22, 3
        // Predicated region
        $region37: #{contra_module_forward.1} parent=31 // pred_check
          %p3117 = pneg %p3116
        $region38: #{contra_module_forward.1} parent=31 // pred_check_branch
          %3119 = sbr.rel (%p3117) target = $region40
        $region39: #{contra_module_forward.1} parent=31 // pred_region
          %v3120 = vld [vmem:[#allocation2] sm:$0xf]
          %v3121 = vld [vmem:[%s2] sm:$0x1]
          %v3123 = vlaneseq
          %v3124 = vshrl.u32 %v3123, 7
          %v3125 = vsub.s32 0, %v3124
          %v3126 = vrot.slane %v3121, %v3125
          %v3128 = vadd.f32 %v3120, %v3126
          %v3129 = vmax.f32 %v3128, 0.0
          %3130 = vst [vmem:[%s202] sm:$0xf] %v3129
        $region40: #{contra_module_forward.1} parent=31 // pred_fallthru
          _
        %s3131 = sand.u32 %s112, 1
        %s3132 = scalar_lea.sflag [#allocation4], %s3131
        %s3133 = sand.u32 %s112, 1
        %s3134 = smul.addr %s3133, 4
        %s3135 = scalar_lea.vmem [#allocation3], %s3134
        // Predicated region
        $region41: #{contra_module_forward.1} parent=31 // pred_check
          %p3136 = pneg %p122
        $region42: #{contra_module_forward.1} parent=31 // pred_check_branch
          %3138 = sbr.rel (%p3136) target = $region44
        $region43: #{contra_module_forward.1} parent=31 // pred_region
          %s3140 = ssub.s32 64, 64
          %3141 = vsyncadd %s3132, %s3140
          %s3142 = smul.addr %s21, 64
          %s3143 = scalar_lea.hbm %s3, %s3142
          %s3145 = sshll.u32 %s3135, 4
          %s3146 = int_to_ptr.vmem [resolvable:$true] %s3145
          %3148 = dma.vmem_to_hbm [thread:$0]  %s3146, 64, %s3143, %s3132
        $region44: #{contra_module_forward.1} parent=31 // pred_fallthru
          _
      $region32: #{contra_module_forward.1} parent=5 // pred_fallthru
        _
      %p3149 = scmp.le.s32.totalorder 2, %s12
      // Predicated region
      $region45: #{contra_module_forward.1} parent=5 // pred_check
        %p3150 = pneg %p3149
      $region46: #{contra_module_forward.1} parent=5 // pred_check_branch
        %3152 = sbr.rel (%p3150) target = $region48
      $region47: #{contra_module_forward.1} parent=5 // pred_region
        %s3153 = ssub.s32 %s12, 2
        // Predicated region
        $region49: #{contra_module_forward.1} parent=47 // pred_check
          %p3154 = pneg %p128
        $region50: #{contra_module_forward.1} parent=47 // pred_check_branch
          %3156 = sbr.rel (%p3154) target = $region52
        $region51: #{contra_module_forward.1} parent=47 // pred_region
          %s3157 = sand.u32 %s113, 1
          %s3158 = scalar_lea.sflag [#allocation4], %s3157
          %s3159 = sand.u32 %s113, 1
          %s3160 = smul.addr %s3159, 4
          %s3161 = scalar_lea.vmem [#allocation3], %s3160
          %3162 = dma.done %s3158, 64
        $region52: #{contra_module_forward.1} parent=47 // pred_fallthru
          _
      $region48: #{contra_module_forward.1} parent=5 // pred_fallthru
        _
    $region6: #{contra_module_forward.1} parent=1 // loop_footer
      %s16 = sadd.s32 1, %s12
    $region7: #{contra_module_forward.1} parent=1 // loop_footer_branch
      %11 = sbr.rel target = $region3
    $region8: #{contra_module_forward.1} parent=1 // loop_exit
      _
    %3163 = vsyncpa [#allocation4], 1
    %s3164 = scalar_lea.sflag [#allocation4], 1
    %3165 = vsyncpa %s3164, 1

</llo_original>
